<compile_context>
chip_gen: v7x
topology: tpu7x:2x2x1
jax: 0.10.0
libtpu: 0.0.40
codegen_flags: <defaults>
</compile_context>

<pallas_src>
import functools

import numpy as np
import jax
import jax.numpy as jnp
from jax.experimental import pallas as pl
from jax.experimental.pallas import tpu as pltpu


def _bilinear_matrix(out_size: int, in_size: int) -> np.ndarray:
    """1-D interpolation matrix matching F.interpolate(mode='bilinear', align_corners=False)."""
    scale = in_size / out_size
    dst = np.arange(out_size, dtype=np.float64)
    src = np.maximum((dst + 0.5) * scale - 0.5, 0.0)
    i0 = np.minimum(np.floor(src).astype(np.int64), in_size - 1)
    i1 = np.minimum(i0 + 1, in_size - 1)
    w1 = (src - i0).astype(np.float32)
    w0 = (1.0 - w1).astype(np.float32)
    m = np.zeros((out_size, in_size), dtype=np.float32)
    np.add.at(m, (np.arange(out_size), i0), w0)
    np.add.at(m, (np.arange(out_size), i1), w1)
    return m


def _pick_hw_tile(hw: int, target: int) -> int:
    """Largest multiple of 8 that divides hw and is <= target (falls back to hw)."""
    t = min(target, hw)
    t -= t % 8
    while t >= 8:
        if hw % t == 0:
            return t
        t -= 8
    return hw


def _attention_kernel(xs_ref, ps_ref, wq_ref, bq_ref, wkv_ref, bkv_ref, fp_ref):
    # Per grid step b (one batch element):
    #   xs_ref : (1, N, C)  f32   stride-subsampled Fi tokens
    #   ps_ref : (1, N, C)  f32   stride-subsampled Pe tokens
    #   wq_ref : (C, C)     bf16  query conv weight, pre-transposed to (in, out)
    #   bq_ref : (1, C)     f32
    #   wkv_ref: (C, 2C)    bf16  [key | value] conv weights, pre-transposed & fused
    #   bkv_ref: (1, 2C)    f32
    #   fp_ref : (1, N, C)  bf16  low-resolution attention output F'
    xs = xs_ref[0]
    xact = xs * ps_ref[0]                       # Fi * Pe at the sample points (exact f32)
    c = xs.shape[-1]

    # 1x1-conv projections: bf16 MXU operands, f32 accumulation.
    q = jnp.dot(xs.astype(jnp.bfloat16), wq_ref[...],
                preferred_element_type=jnp.float32) + bq_ref[...]
    kv = jnp.dot(xact.astype(jnp.bfloat16), wkv_ref[...],
                 preferred_element_type=jnp.float32) + bkv_ref[...]
    k = kv[:, :c]
    v = kv[:, c:]

    # Attention over the N low-res tokens (N x N is tiny; keep operands f32).
    trans_b = (((1,), (1,)), ((), ()))          # q @ k^T without materializing a transpose
    scores = jax.lax.dot_general(q, k, trans_b, preferred_element_type=jnp.float32)
    scores = scores * (1.0 / float(c) ** 0.5)
    m = jnp.max(scores, axis=-1, keepdims=True)
    e = jnp.exp(scores - m)
    attn = e * pl.reciprocal(jnp.sum(e, axis=-1, keepdims=True), approx=True)

    fp = jnp.dot(attn, v, preferred_element_type=jnp.float32)   # (N, C) f32
    fp_ref[0] = fp.astype(jnp.bfloat16)


def _upsample_residual_kernel(fp_ref, up_ref, fi_ref, gamma_ref, out_ref):
    # Per grid step (b, t):
    #   fp_ref   : (1, N, C) bf16  F' for batch b (block index constant over t -> DMA'd once/b)
    #   up_ref   : (T, N)    bf16  rows [t*T, (t+1)*T) of kron(U_h, U_w) bilinear map
    #   fi_ref   : (1, T, C) f32   residual tile of Fi
    #   gamma_ref: (1,)      f32   SMEM scalar
    #   out_ref  : (1, T, C) f32
    fup = jnp.dot(up_ref[...], fp_ref[0], preferred_element_type=jnp.float32)
    out_ref[0] = gamma_ref[0] * fup + fi_ref[0]


@functools.partial(jax.jit, static_argnames=("stride", "hw_block"))
def prior_aligned_injector(Fi, Pe, wq, bq, wk, bk, wv, bv, gamma, *, stride=4,
                           hw_block=1024):
    """Fi: (B, H, W, C) channel-last (SAM ViT block output).  Pe: (B, C, H, W).
    Returns (B, H, W, C), matching PriorAlignedInjector.forward (hidden_dim == C)."""
    B, H, W, C = Fi.shape
    HW = H * W
    Hd = (H - 1) // stride + 1
    Wd = (W - 1) // stride + 1
    N = Hd * Wd
    T = _pick_hw_tile(HW, hw_block)
    n_hw_tiles = HW // T

    # ---- layout plumbing only (views / tiny strided slices, no big transposes) ----
    fi_tok = Fi.reshape(B, HW, C).astype(jnp.float32)
    xs_tok = Fi[:, ::stride, ::stride, :].reshape(B, N, C).astype(jnp.float32)
    ps_tok = jnp.transpose(Pe[:, :, ::stride, ::stride], (0, 2, 3, 1)) \
                .reshape(B, N, C).astype(jnp.float32)

    # 1x1 conv weights: pre-transpose once to (in, out); fuse K|V into one matmul; bf16.
    wqT = wq.reshape(C, C).T.astype(jnp.bfloat16)
    wkvT = jnp.concatenate([wk.reshape(C, C).T, wv.reshape(C, C).T],
                           axis=1).astype(jnp.bfloat16)              # (C, 2C)
    bq2 = bq.reshape(1, C).astype(jnp.float32)
    bkv = jnp.concatenate([bk.reshape(1, C), bv.reshape(1, C)],
                          axis=1).astype(jnp.float32)                # (1, 2C)

    # Bilinear (align_corners=False) upsample folded into one (HW, N) matrix; its
    # entries for stride-4 are dyadic rationals, exact in bf16.
    up = jnp.asarray(np.kron(_bilinear_matrix(H, Hd), _bilinear_matrix(W, Wd)),
                     dtype=jnp.bfloat16)
    gamma1 = gamma.reshape(1).astype(jnp.float32)

    # ---- kernel 1: low-res 1x1-conv projections + attention -> F' (B, N, C) -------
    fprime = pl.pallas_call(
        _attention_kernel,
        out_shape=jax.ShapeDtypeStruct((B, N, C), jnp.bfloat16),
        grid=(B,),
        in_specs=[
            pl.BlockSpec((1, N, C), lambda b: (b, 0, 0)),
            pl.BlockSpec((1, N, C), lambda b: (b, 0, 0)),
            # Grid-invariant operands: single-buffered (DMA'd once, save VMEM).
            pl.BlockSpec((C, C), lambda b: (0, 0), pipeline_mode=pl.Buffered(1)),
            pl.BlockSpec((1, C), lambda b: (0, 0), pipeline_mode=pl.Buffered(1)),
            pl.BlockSpec((C, 2 * C), lambda b: (0, 0), pipeline_mode=pl.Buffered(1)),
            pl.BlockSpec((1, 2 * C), lambda b: (0, 0), pipeline_mode=pl.Buffered(1)),
        ],
        out_specs=pl.BlockSpec((1, N, C), lambda b: (b, 0, 0)),
        compiler_params=pltpu.CompilerParams(
            dimension_semantics=("parallel",),
            vmem_limit_bytes=64 * 1024 * 1024),
    )(xs_tok, ps_tok, wqT, bq2, wkvT, bkv)

    # ---- kernel 2: HW-tiled bilinear upsample + gamma-scaled residual -------------
    out_tok = pl.pallas_call(
        _upsample_residual_kernel,
        out_shape=jax.ShapeDtypeStruct((B, HW, C), jnp.float32),
        grid=(B, n_hw_tiles),
        in_specs=[
            pl.BlockSpec((1, N, C), lambda b, t: (b, 0, 0)),   # F'_b, constant over t
            pl.BlockSpec((T, N), lambda b, t: (t, 0)),          # up rows for this tile
            pl.BlockSpec((1, T, C), lambda b, t: (b, t, 0)),    # Fi residual tile
            pl.BlockSpec(memory_space=pltpu.MemorySpace.SMEM),  # gamma scalar
        ],
        out_specs=pl.BlockSpec((1, T, C), lambda b, t: (b, t, 0)),
        compiler_params=pltpu.CompilerParams(
            dimension_semantics=("parallel", "parallel"),
            vmem_limit_bytes=64 * 1024 * 1024),
    )(fprime, up, fi_tok, gamma1)

    return out_tok.reshape(B, H, W, C)


def _reference(Fi, Pe, wq, bq, wk, bk, wv, bv, gamma, stride=4):
    """Plain-JAX f32 mirror of PriorAlignedInjector.forward (numerical check)."""
    B, H, W, C = Fi.shape
    hp = jax.lax.Precision.HIGHEST
    Fi_nchw = jnp.transpose(Fi, (0, 3, 1, 2))
    F_act = Fi_nchw * Pe

    def conv1x1(x, w, b):
        xs = x[:, :, ::stride, ::stride]
        return (jnp.einsum("oc,bchw->bohw", w.reshape(C, C), xs, precision=hp)
                + b[None, :, None, None])

    Q = conv1x1(Fi_nchw, wq, bq)
    K = conv1x1(F_act, wk, bk)
    V = conv1x1(F_act, wv, bv)
    _, _, Hd, Wd = Q.shape
    N = Hd * Wd
    Qf, Kf, Vf = (t.reshape(B, C, N) for t in (Q, K, V))
    att = jnp.einsum("bcn,bcm->bnm", Qf, Kf, precision=hp) / (C ** 0.5)
    att = jax.nn.softmax(att, axis=-1)
    Fp = jnp.einsum("bnm,bcm->bnc", att, Vf, precision=hp)
    Fp = jnp.transpose(Fp, (0, 2, 1)).reshape(B, C, Hd, Wd)
    Uh = jnp.asarray(_bilinear_matrix(H, Hd))
    Uw = jnp.asarray(_bilinear_matrix(W, Wd))
    Fup = jnp.einsum("hp,wq,bcpq->bchw", Uh, Uw, Fp, precision=hp)
    out = gamma.reshape(()) * Fup + Fi_nchw
    return jnp.transpose(out, (0, 2, 3, 1))


if __name__ == "__main__":
    # Small shapes consistent with the module: in_channels = hidden_dim = C,
    # 1x1 convs with stride 4, Fi channel-last (SAM ViT block output), Pe NCHW.
    B, H, W, C = 2, 16, 16, 128
    stride = 4

    key = jax.random.PRNGKey(0)
    k_fi, k_pe, kq, kbq, kk, kbk, kv, kbv = jax.random.split(key, 8)

    Fi = jax.random.normal(k_fi, (B, H, W, C), jnp.float32)
    Pe = jax.random.normal(k_pe, (B, C, H, W), jnp.float32)

    wq = jax.random.normal(kq, (C, C, 1, 1), jnp.float32) * 0.05
    bq = jax.random.normal(kbq, (C,), jnp.float32) * 0.1
    wk = jax.random.normal(kk, (C, C, 1, 1), jnp.float32) * 0.05
    bk = jax.random.normal(kbk, (C,), jnp.float32) * 0.1
    wv = jax.random.normal(kv, (C, C, 1, 1), jnp.float32) * 0.05
    bv = jax.random.normal(kbv, (C,), jnp.float32) * 0.1
    # nn.Parameter(torch.zeros(1)) initializes to 0; use a nonzero value so the
    # attention + upsample path is actually exercised by the check.
    gamma = jnp.array([0.5], jnp.float32)

    # hw_block=64 forces multiple HW tiles (256/64 = 4) so the tiled path is exercised.
    out = prior_aligned_injector(Fi, Pe, wq, bq, wk, bk, wv, bv, gamma,
                                 stride=stride, hw_block=64)
    jax.block_until_ready(out)
    assert out.shape == (B, H, W, C), out.shape

    # Tolerance reflects bf16 MXU operands with f32 accumulation (observed abs error
    # is a few 1e-3 against the f32 HIGHEST-precision reference).
    ref = _reference(Fi, Pe, wq, bq, wk, bk, wv, bv, gamma, stride=stride)
    max_err = float(jnp.max(jnp.abs(out - ref)))
    assert jnp.allclose(out, ref, atol=1e-2, rtol=1e-2), max_err

    print("KERNEL_OK")
</pallas_src>

<mosaic_0001>
module attributes {stable_mosaic.version = 11 : i64} {
  func.func @_upsample_residual_kernel(%arg0: i32, %arg1: i32, %arg2: memref<1x16x128xbf16, #tpu.memory_space<vmem>>, %arg3: memref<64x16xbf16, #tpu.memory_space<vmem>>, %arg4: memref<1x64x128xf32, #tpu.memory_space<vmem>>, %arg5: memref<1xf32, #tpu.memory_space<smem>>, %arg6: memref<1x64x128xf32, #tpu.memory_space<vmem>>) attributes {dimension_semantics = [#tpu.dimension_semantics<parallel>, #tpu.dimension_semantics<parallel>], iteration_bounds = array<i64: 2, 4>, scalar_prefetch = 0 : i64, scratch_operands = 0 : i64, tpu.core_type = #tpu.core_type<tc>, window_params = [{transform_indices = @transform_0, window_bounds = array<i64: 1, 16, 128>}, {transform_indices = @transform_1, window_bounds = array<i64: 64, 16>}, {transform_indices = @transform_2, window_bounds = array<i64: 1, 64, 128>}, {transform_indices = @transform_3, window_bounds = array<i64: 1>}, {transform_indices = @transform_4, window_bounds = array<i64: 1, 64, 128>}]} {
    %c0 = arith.constant 0 : index
    %c0_0 = arith.constant 0 : index
    %0 = vector.load %arg3[%c0, %c0_0] : memref<64x16xbf16, #tpu.memory_space<vmem>>, vector<64x16xbf16>
    %c0_1 = arith.constant 0 : index
    %c0_2 = arith.constant 0 : index
    %c0_3 = arith.constant 0 : index
    %1 = vector.load %arg2[%c0_1, %c0_2, %c0_3] : memref<1x16x128xbf16, #tpu.memory_space<vmem>>, vector<1x16x128xbf16>
    %2 = vector.shape_cast %1 : vector<1x16x128xbf16> to vector<16x128xbf16>
    %cst = arith.constant dense<0.000000e+00> : vector<64x128xf32>
    %3 = tpu.matmul %0, %2, %cst {dimension_numbers = #tpu.dot_dimension_numbers<[1], [0], [0], [1], [0, 0, 1, 1], [], []>} : vector<64x16xbf16>, vector<16x128xbf16>, vector<64x128xf32> -> vector<64x128xf32>
    %c0_4 = arith.constant 0 : index
    %4 = memref.load %arg5[%c0_4] : memref<1xf32, #tpu.memory_space<smem>>
    %5 = vector.broadcast %4 : f32 to vector<64x128xf32>
    %6 = arith.mulf %5, %3 : vector<64x128xf32>
    %c0_5 = arith.constant 0 : index
    %c0_6 = arith.constant 0 : index
    %c0_7 = arith.constant 0 : index
    %7 = vector.load %arg4[%c0_5, %c0_6, %c0_7] : memref<1x64x128xf32, #tpu.memory_space<vmem>>, vector<1x64x128xf32>
    %8 = vector.shape_cast %7 : vector<1x64x128xf32> to vector<64x128xf32>
    %9 = arith.addf %6, %8 : vector<64x128xf32>
    %c0_8 = arith.constant 0 : index
    %c0_9 = arith.constant 0 : index
    %c0_10 = arith.constant 0 : index
    %10 = vector.load %arg6[%c0_8, %c0_9, %c0_10] : memref<1x64x128xf32, #tpu.memory_space<vmem>>, vector<1x64x128xf32>
    %11 = vector.shape_cast %10 : vector<1x64x128xf32> to vector<64x128xf32>
    %12 = vector.shape_cast %9 : vector<64x128xf32> to vector<1x64x128xf32>
    tpu.vector_store %arg6[%c0_8, %c0_9, %c0_10], %12 {strides = array<i32>} : memref<1x64x128xf32, #tpu.memory_space<vmem>>, vector<1x64x128xf32>,
    return
  }
  func.func @transform_0(%arg0: i32, %arg1: i32) -> (i32, i32, i32) {
    %c0_i32 = arith.constant 0 : i32
    %c0_i32_0 = arith.constant 0 : i32
    %c0_i32_1 = arith.constant 0 : i32
    return %arg0, %c0_i32, %c0_i32_0 : i32, i32, i32
  }
  func.func @transform_1(%arg0: i32, %arg1: i32) -> (i32, i32) {
    %c0_i32 = arith.constant 0 : i32
    %c0_i32_0 = arith.constant 0 : i32
    return %arg1, %c0_i32 : i32, i32
  }
  func.func @transform_2(%arg0: i32, %arg1: i32) -> (i32, i32, i32) {
    %c0_i32 = arith.constant 0 : i32
    %c0_i32_0 = arith.constant 0 : i32
    return %arg0, %arg1, %c0_i32 : i32, i32, i32
  }
  func.func @transform_3(%arg0: i32, %arg1: i32) -> i32 {
    %c0_i32 = arith.constant 0 : i32
    %c0_i32_0 = arith.constant 0 : i32
    return %c0_i32 : i32
  }
  func.func @transform_4(%arg0: i32, %arg1: i32) -> (i32, i32, i32) {
    %c0_i32 = arith.constant 0 : i32
    %c0_i32_0 = arith.constant 0 : i32
    return %arg0, %arg1, %c0_i32 : i32, i32, i32
  }
}

module attributes {stable_mosaic.version = 11 : i64} {
  func.func @_attention_kernel(%arg0: i32, %arg1: memref<1x16x128xf32, #tpu.memory_space<vmem>>, %arg2: memref<1x16x128xf32, #tpu.memory_space<vmem>>, %arg3: memref<128x128xbf16, #tpu.memory_space<vmem>>, %arg4: memref<1x128xf32, #tpu.memory_space<vmem>>, %arg5: memref<128x256xbf16, #tpu.memory_space<vmem>>, %arg6: memref<1x256xf32, #tpu.memory_space<vmem>>, %arg7: memref<1x16x128xbf16, #tpu.memory_space<vmem>>) attributes {dimension_semantics = [#tpu.dimension_semantics<parallel>], iteration_bounds = array<i64: 2>, scalar_prefetch = 0 : i64, scratch_operands = 0 : i64, tpu.core_type = #tpu.core_type<tc>, window_params = [{transform_indices = @transform_0, window_bounds = array<i64: 1, 16, 128>}, {transform_indices = @transform_1, window_bounds = array<i64: 1, 16, 128>}, {pipeline_mode = #tpu.pipeline_mode<synchronous>, transform_indices = @transform_2, window_bounds = array<i64: 128, 128>}, {pipeline_mode = #tpu.pipeline_mode<synchronous>, transform_indices = @transform_3, window_bounds = array<i64: 1, 128>}, {pipeline_mode = #tpu.pipeline_mode<synchronous>, transform_indices = @transform_4, window_bounds = array<i64: 128, 256>}, {pipeline_mode = #tpu.pipeline_mode<synchronous>, transform_indices = @transform_5, window_bounds = array<i64: 1, 256>}, {transform_indices = @transform_6, window_bounds = array<i64: 1, 16, 128>}]} {
    %c0 = arith.constant 0 : index
    %c0_0 = arith.constant 0 : index
    %c0_1 = arith.constant 0 : index
    %0 = vector.load %arg1[%c0, %c0_0, %c0_1] : memref<1x16x128xf32, #tpu.memory_space<vmem>>, vector<1x16x128xf32>
    %1 = vector.shape_cast %0 : vector<1x16x128xf32> to vector<16x128xf32>
    %c0_2 = arith.constant 0 : index
    %c0_3 = arith.constant 0 : index
    %c0_4 = arith.constant 0 : index
    %2 = vector.load %arg2[%c0_2, %c0_3, %c0_4] : memref<1x16x128xf32, #tpu.memory_space<vmem>>, vector<1x16x128xf32>
    %3 = vector.shape_cast %2 : vector<1x16x128xf32> to vector<16x128xf32>
    %4 = arith.mulf %1, %3 : vector<16x128xf32>
    %5 = arith.truncf %1 : vector<16x128xf32> to vector<16x128xbf16>
    %c0_5 = arith.constant 0 : index
    %c0_6 = arith.constant 0 : index
    %6 = vector.load %arg3[%c0_5, %c0_6] : memref<128x128xbf16, #tpu.memory_space<vmem>>, vector<128x128xbf16>
    %cst = arith.constant dense<0.000000e+00> : vector<16x128xf32>
    %7 = tpu.matmul %5, %6, %cst {dimension_numbers = #tpu.dot_dimension_numbers<[1], [0], [0], [1], [0, 0, 1, 1], [], []>} : vector<16x128xbf16>, vector<128x128xbf16>, vector<16x128xf32> -> vector<16x128xf32>
    %c0_7 = arith.constant 0 : index
    %c0_8 = arith.constant 0 : index
    %8 = vector.load %arg4[%c0_7, %c0_8] : memref<1x128xf32, #tpu.memory_space<vmem>>, vector<1x128xf32>
    %9 = vector.broadcast %8 : vector<1x128xf32> to vector<16x128xf32>
    %10 = arith.addf %7, %9 : vector<16x128xf32>
    %11 = arith.truncf %4 : vector<16x128xf32> to vector<16x128xbf16>
    %c0_9 = arith.constant 0 : index
    %c0_10 = arith.constant 0 : index
    %12 = vector.load %arg5[%c0_9, %c0_10] : memref<128x256xbf16, #tpu.memory_space<vmem>>, vector<128x256xbf16>
    %cst_11 = arith.constant dense<0.000000e+00> : vector<16x256xf32>
    %13 = tpu.matmul %11, %12, %cst_11 {dimension_numbers = #tpu.dot_dimension_numbers<[1], [0], [0], [1], [0, 0, 1, 1], [], []>} : vector<16x128xbf16>, vector<128x256xbf16>, vector<16x256xf32> -> vector<16x256xf32>
    %c0_12 = arith.constant 0 : index
    %c0_13 = arith.constant 0 : index
    %14 = vector.load %arg6[%c0_12, %c0_13] : memref<1x256xf32, #tpu.memory_space<vmem>>, vector<1x256xf32>
    %15 = vector.broadcast %14 : vector<1x256xf32> to vector<16x256xf32>
    %16 = arith.addf %13, %15 : vector<16x256xf32>
    %17 = vector.extract_strided_slice %16 {offsets = [0, 0], sizes = [16, 128], strides = [1, 1]} : vector<16x256xf32> to vector<16x128xf32>
    %18 = vector.extract_strided_slice %16 {offsets = [0, 128], sizes = [16, 128], strides = [1, 1]} : vector<16x256xf32> to vector<16x128xf32>
    %cst_14 = arith.constant dense<0.000000e+00> : vector<16x16xf32>
    %19 = tpu.matmul %10, %17, %cst_14 {dimension_numbers = #tpu.dot_dimension_numbers<[1], [1], [0], [0], [0, 0, 1, 0], [], []>} : vector<16x128xf32>, vector<16x128xf32>, vector<16x16xf32> -> vector<16x16xf32>
    %cst_15 = arith.constant 0.0883883461 : f32
    %20 = vector.broadcast %cst_15 : f32 to vector<16x16xf32>
    %21 = arith.mulf %19, %20 : vector<16x16xf32>
    %cst_16 = arith.constant dense<0xFF800000> : vector<16xf32>
    %22 = vector.multi_reduction <maximumf>, %21, %cst_16 [1] : vector<16x16xf32> to vector<16xf32>
    %23 = vector.shape_cast %22 : vector<16xf32> to vector<16x1xf32>
    %24 = vector.broadcast %23 : vector<16x1xf32> to vector<16x16xf32>
    %25 = arith.subf %21, %24 : vector<16x16xf32>
    %26 = math.exp %25 : vector<16x16xf32>
    %cst_17 = arith.constant dense<0.000000e+00> : vector<16xf32>
    %27 = vector.multi_reduction <add>, %26, %cst_17 [1] : vector<16x16xf32> to vector<16xf32>
    %28 = vector.shape_cast %27 : vector<16xf32> to vector<16x1xf32>
    %29 = tpu.reciprocal %28 {approx = true} : vector<16x1xf32> -> vector<16x1xf32>
    %30 = vector.broadcast %29 : vector<16x1xf32> to vector<16x16xf32>
    %31 = arith.mulf %26, %30 : vector<16x16xf32>
    %cst_18 = arith.constant dense<0.000000e+00> : vector<16x128xf32>
    %32 = tpu.matmul %31, %18, %cst_18 {dimension_numbers = #tpu.dot_dimension_numbers<[1], [0], [0], [1], [0, 0, 1, 1], [], []>} : vector<16x16xf32>, vector<16x128xf32>, vector<16x128xf32> -> vector<16x128xf32>
    %33 = arith.truncf %32 : vector<16x128xf32> to vector<16x128xbf16>
    %c0_19 = arith.constant 0 : index
    %c0_20 = arith.constant 0 : index
    %c0_21 = arith.constant 0 : index
    %34 = vector.load %arg7[%c0_19, %c0_20, %c0_21] : memref<1x16x128xbf16, #tpu.memory_space<vmem>>, vector<1x16x128xbf16>
    %35 = vector.shape_cast %34 : vector<1x16x128xbf16> to vector<16x128xbf16>
    %36 = vector.shape_cast %33 : vector<16x128xbf16> to vector<1x16x128xbf16>
    tpu.vector_store %arg7[%c0_19, %c0_20, %c0_21], %36 {strides = array<i32>} : memref<1x16x128xbf16, #tpu.memory_space<vmem>>, vector<1x16x128xbf16>,
    return
  }
  func.func @transform_0(%arg0: i32) -> (i32, i32, i32) {
    %c0_i32 = arith.constant 0 : i32
    %c0_i32_0 = arith.constant 0 : i32
    %c0_i32_1 = arith.constant 0 : i32
    return %arg0, %c0_i32, %c0_i32_0 : i32, i32, i32
  }
  func.func @transform_1(%arg0: i32) -> (i32, i32, i32) {
    %c0_i32 = arith.constant 0 : i32
    %c0_i32_0 = arith.constant 0 : i32
    %c0_i32_1 = arith.constant 0 : i32
    return %arg0, %c0_i32, %c0_i32_0 : i32, i32, i32
  }
  func.func @transform_2(%arg0: i32) -> (i32, i32) {
    %c0_i32 = arith.constant 0 : i32
    %c0_i32_0 = arith.constant 0 : i32
    %c0_i32_1 = arith.constant 0 : i32
    return %c0_i32, %c0_i32_0 : i32, i32
  }
  func.func @transform_3(%arg0: i32) -> (i32, i32) {
    %c0_i32 = arith.constant 0 : i32
    %c0_i32_0 = arith.constant 0 : i32
    %c0_i32_1 = arith.constant 0 : i32
    return %c0_i32, %c0_i32_0 : i32, i32
  }
  func.func @transform_4(%arg0: i32) -> (i32, i32) {
    %c0_i32 = arith.constant 0 : i32
    %c0_i32_0 = arith.constant 0 : i32
    %c0_i32_1 = arith.constant 0 : i32
    return %c0_i32, %c0_i32_0 : i32, i32
  }
  func.func @transform_5(%arg0: i32) -> (i32, i32) {
    %c0_i32 = arith.constant 0 : i32
    %c0_i32_0 = arith.constant 0 : i32
    %c0_i32_1 = arith.constant 0 : i32
    return %c0_i32, %c0_i32_0 : i32, i32
  }
  func.func @transform_6(%arg0: i32) -> (i32, i32, i32) {
    %c0_i32 = arith.constant 0 : i32
    %c0_i32_0 = arith.constant 0 : i32
    %c0_i32_1 = arith.constant 0 : i32
    return %arg0, %c0_i32, %c0_i32_0 : i32, i32, i32
  }
}

</mosaic_0001>

<llo_original>
// kernel: prior_aligned_injector.3
$region0: #{prior_aligned_injector.3}
  #allocation0 [shape = 'u32[]', space=smem, size = 0x4, offset = 0x4, fixed_abs, tag = 'smem constant byte address 0x4 - core index']
  #allocation1 [shape = 'u32[144,128]{1,0:T(1,128)}', space=vmem, size = 0x12000, scoped, tag = 'internal scratch']
  #allocation2 [shape = 'f32[1]{0:T(128)S(6)}', space=smem, size = 0x200, scoped, tag = 'scoped memory for prior_aligned_injector.3']
  %s0 = inlined_call_operand.hbm [shape: bf16[2,16,128], index: 0, kind: input, shape index: {}]
  %s1 = inlined_call_operand.hbm [shape: bf16[256,16], index: 1, kind: input, shape index: {}]
  %s2 = inlined_call_operand.hbm [shape: f32[2,256,128], index: 2, kind: input, shape index: {}]
  %s3 = inlined_call_operand.<no memory space> [shape: f32[1], index: 3, kind: input, shape index: {}]
  %s4 = inlined_call_operand.hbm [shape: f32[2,256,128], index: 4, kind: output, shape index: {}]
  %s5 = sld [smem:[#allocation0]]
  $region61: #{prior_aligned_injector.3} parent=0
    _
  %s7 = ssub.s32 1, %s5
  %s8 = scalar_select 0, %s7, %s5
  %9 = sst [smem:[#allocation2]] %s3
  $region1: #{prior_aligned_injector.3} parent=0
    #allocation3 [shape = 'u8[8192]{0}', space=vmem, size = 0x2000, scoped, tag = 'input window, operand 0']
    #allocation4 [shape = 's32[2]{0}', space=sflag, size = 0x8, scoped, tag = 'scoped memory for prior_aligned_injector.3']
    #allocation5 [shape = 's32[2]{0}', space=sflag, size = 0x8, scoped, tag = 'scoped memory for prior_aligned_injector.3']
    #allocation6 [shape = 'u8[32768]{0}', space=vmem, size = 0x8000, scoped, tag = 'input window, operand 1']
    #allocation7 [shape = 's32[2]{0}', space=sflag, size = 0x8, scoped, tag = 'scoped memory for prior_aligned_injector.3']
    #allocation8 [shape = 'u8[65536]{0}', space=vmem, size = 0x10000, scoped, tag = 'input window, operand 2']
    #allocation9 [shape = 'u8[65536]{0}', space=vmem, size = 0x10000, scoped, tag = 'output window, operand 0']
    %10 = vsyncpa [#allocation4], 0
    %s11 = scalar_lea.sflag [#allocation4], 1
    %12 = vsyncpa %s11, 0
    %13 = vsyncpa [#allocation7], 0
    %s14 = scalar_lea.sflag [#allocation7], 1
    %15 = vsyncpa %s14, 0
    %16 = vsyncpa [#allocation5], 0
    %s17 = scalar_lea.sflag [#allocation5], 1
    %18 = vsyncpa %s17, 0
    loop: start=0, step=1, limit=10
    $region2: #{prior_aligned_injector.3} parent=1 // loop_pre_header
      _
    $region3: #{prior_aligned_injector.3} parent=1 // loop_header
      %s20 = sphi 0, %s24
      %p21 = scmp.ge.s32.totalorder %s20, 10
      %s27 = sphi 0, %s39
      %s28 = sphi 0, %s35
      %s29 = sphi 0, %s27
      %s30 = sphi 0, %s28
      %s31 = sphi 0, %s29
      %s32 = sphi 0, %s30
      %s42 = sphi 0, %s44
      %s45 = sphi 0, %s42
      %s46 = sphi 0, %s45
      %s62 = sphi 0, %s46
      %s68 = sphi 0, %s70
      %s71 = sphi 0, %s68
      %s72 = sphi 0, %s71
      %s88 = sphi 0, %s72
      %s96 = sphi 0, %s98
      %s99 = sphi 0, %s96
      %s100 = sphi 0, %s99
      %s116 = sphi 0, %s100
      %s120 = sphi 0, %s120
      %s122 = sphi 0, %s120
      %s123 = sphi 0, %s122
      %s137 = sphi 0, %s123
      %s145 = sphi 0, %s147
      %s148 = sphi 0, %s145
      %s149 = sphi 0, %s148
      %s165 = sphi 0, %s149
    $region4: #{prior_aligned_injector.3} parent=1 // loop_header_branch
      %23 = sbr.rel (%p21) target = $region8
    $region5: #{prior_aligned_injector.3} parent=1 // loop_body
      %s25 = ssub.s32 %s20, 1
      %s26 = ssub.s32 %s20, 2
      %s33 = sadd.s32 1, %s28
      %p34 = scmp.ge.s32.totalorder %s33, 4
      %s35 = scalar_select %p34, 0, %s33
      %s36 = sadd.s32 1, %s27
      %s37 = scalar_select %p34, %s36, %s27
      %p38 = scmp.ge.s32.totalorder %s37, 2
      %s39 = scalar_select %p38, 0, %s37
      %s40 = ssub.s32 %s27, %s39
      %p41 = scmp.eq.s32.totalorder %s40, 0
      %s43 = sadd.s32 %s42, 1
      %s44 = scalar_select %p41, %s42, %s43
      %p47 = pneg %p41
      %p48 = scmp.eq.s32.totalorder %s20, 7
      %p49 = por %p47, %p48
      %p50 = scmp.ne.s32.totalorder %s42, %s45
      %p51 = scmp.eq.s32.totalorder %s20, 0
      %p52 = por %p50, %p51
      %p53 = scmp.ne.s32.totalorder %s42, %s45
      %p54 = scmp.eq.s32.totalorder %s25, 7
      %p55 = por %p53, %p54
      %p56 = scmp.ne.s32.totalorder %s45, %s46
      %p57 = scmp.eq.s32.totalorder %s25, 0
      %p58 = por %p56, %p57
      %p59 = scmp.ne.s32.totalorder %s45, %s46
      %p60 = scmp.eq.s32.totalorder %s26, 7
      %p61 = por %p59, %p60
      %p63 = scmp.ne.s32.totalorder %s46, %s62
      %p64 = scmp.eq.s32.totalorder %s26, 0
      %p65 = por %p63, %p64
      %s66 = ssub.s32 %s28, %s35
      %p67 = scmp.eq.s32.totalorder %s66, 0
      %s69 = sadd.s32 %s68, 1
      %s70 = scalar_select %p67, %s68, %s69
      %p73 = pneg %p67
      %p74 = scmp.eq.s32.totalorder %s20, 7
      %p75 = por %p73, %p74
      %p76 = scmp.ne.s32.totalorder %s68, %s71
      %p77 = scmp.eq.s32.totalorder %s20, 0
      %p78 = por %p76, %p77
      %p79 = scmp.ne.s32.totalorder %s68, %s71
      %p80 = scmp.eq.s32.totalorder %s25, 7
      %p81 = por %p79, %p80
      %p82 = scmp.ne.s32.totalorder %s71, %s72
      %p83 = scmp.eq.s32.totalorder %s25, 0
      %p84 = por %p82, %p83
      %p85 = scmp.ne.s32.totalorder %s71, %s72
      %p86 = scmp.eq.s32.totalorder %s26, 7
      %p87 = por %p85, %p86
      %p89 = scmp.ne.s32.totalorder %s72, %s88
      %p90 = scmp.eq.s32.totalorder %s26, 0
      %p91 = por %p89, %p90
      %s92 = ssub.s32 %s27, %s39
      %s93 = ssub.s32 %s28, %s35
      %s94 = sor.u32 %s92, %s93
      %p95 = scmp.eq.s32.totalorder %s94, 0
      %s97 = sadd.s32 %s96, 1
      %s98 = scalar_select %p95, %s96, %s97
      %p101 = pneg %p95
      %p102 = scmp.eq.s32.totalorder %s20, 7
      %p103 = por %p101, %p102
      %p104 = scmp.ne.s32.totalorder %s96, %s99
      %p105 = scmp.eq.s32.totalorder %s20, 0
      %p106 = por %p104, %p105
      %p107 = scmp.ne.s32.totalorder %s96, %s99
      %p108 = scmp.eq.s32.totalorder %s25, 7
      %p109 = por %p107, %p108
      %p110 = scmp.ne.s32.totalorder %s99, %s100
      %p111 = scmp.eq.s32.totalorder %s25, 0
      %p112 = por %p110, %p111
      %p113 = scmp.ne.s32.totalorder %s99, %s100
      %p114 = scmp.eq.s32.totalorder %s26, 7
      %p115 = por %p113, %p114
      %p117 = scmp.ne.s32.totalorder %s100, %s116
      %p118 = scmp.eq.s32.totalorder %s26, 0
      %p119 = por %p117, %p118
      %s121 = sadd.s32 %s120, 1
      %p124 = scmp.eq.s32.totalorder %s20, 7
      %p125 = scmp.ne.s32.totalorder %s120, %s122
      %p126 = scmp.eq.s32.totalorder %s20, 0
      %p127 = por %p125, %p126
      %p128 = scmp.ne.s32.totalorder %s120, %s122
      %p129 = scmp.eq.s32.totalorder %s25, 7
      %p130 = por %p128, %p129
      %p131 = scmp.ne.s32.totalorder %s122, %s123
      %p132 = scmp.eq.s32.totalorder %s25, 0
      %p133 = por %p131, %p132
      %p134 = scmp.ne.s32.totalorder %s122, %s123
      %p135 = scmp.eq.s32.totalorder %s26, 7
      %p136 = por %p134, %p135
      %p138 = scmp.ne.s32.totalorder %s123, %s137
      %p139 = scmp.eq.s32.totalorder %s26, 0
      %p140 = por %p138, %p139
      %s141 = ssub.s32 %s27, %s39
      %s142 = ssub.s32 %s28, %s35
      %s143 = sor.u32 %s141, %s142
      %p144 = scmp.eq.s32.totalorder %s143, 0
      %s146 = sadd.s32 %s145, 1
      %s147 = scalar_select %p144, %s145, %s146
      %p150 = pneg %p144
      %p151 = scmp.eq.s32.totalorder %s20, 7
      %p152 = por %p150, %p151
      %p153 = scmp.ne.s32.totalorder %s145, %s148
      %p154 = scmp.eq.s32.totalorder %s20, 0
      %p155 = por %p153, %p154
      %p156 = scmp.ne.s32.totalorder %s145, %s148
      %p157 = scmp.eq.s32.totalorder %s25, 7
      %p158 = por %p156, %p157
      %p159 = scmp.ne.s32.totalorder %s148, %s149
      %p160 = scmp.eq.s32.totalorder %s25, 0
      %p161 = por %p159, %p160
      %p162 = scmp.ne.s32.totalorder %s148, %s149
      %p163 = scmp.eq.s32.totalorder %s26, 7
      %p164 = por %p162, %p163
      %p166 = scmp.ne.s32.totalorder %s149, %s165
      %p167 = scmp.eq.s32.totalorder %s26, 0
      %p168 = por %p166, %p167
      %p169 = scmp.le.s32.totalorder 1, %s20
      %p170 = scmp.lt.s32.totalorder %s20, 9
      %p171 = pnand %p169, %p170
      %p172 = pneg %p171
      // Predicated region
      $region9: #{prior_aligned_injector.3} parent=5 // pred_check
        _
      $region10: #{prior_aligned_injector.3} parent=5 // pred_check_branch
        %174 = sbr.rel (%p171) target = $region12
      $region11: #{prior_aligned_injector.3} parent=5 // pred_region
        %s175 = ssub.s32 %s20, 1
        // Predicated region
        $region13: #{prior_aligned_injector.3} parent=11 // pred_check
          %p176 = pneg %p133
        $region14: #{prior_aligned_injector.3} parent=11 // pred_check_branch
          %178 = sbr.rel (%p176) target = $region16
        $region15: #{prior_aligned_injector.3} parent=11 // pred_region
          _
        $region16: #{prior_aligned_injector.3} parent=11 // pred_fallthru
          _
      $region12: #{prior_aligned_injector.3} parent=5 // pred_fallthru
        _
      %p179 = scmp.lt.s32.totalorder %s20, 8
      // Predicated region
      $region17: #{prior_aligned_injector.3} parent=5 // pred_check
        %p180 = pneg %p179
      $region18: #{prior_aligned_injector.3} parent=5 // pred_check_branch
        %182 = sbr.rel (%p180) target = $region20
      $region19: #{prior_aligned_injector.3} parent=5 // pred_region
        // Predicated region
        $region21: #{prior_aligned_injector.3} parent=19 // pred_check
          %p183 = pneg %p52
        $region22: #{prior_aligned_injector.3} parent=19 // pred_check_branch
          %185 = sbr.rel (%p183) target = $region24
        $region23: #{prior_aligned_injector.3} parent=19 // pred_region
          %s186 = sand.u32 %s42, 1
          %s187 = scalar_lea.sflag [#allocation4], %s186
          %s188 = sand.u32 %s42, 1
          %s189 = smul.addr %s188, 8
          %s190 = scalar_lea.vmem [#allocation3], %s189
          %s192 = ssub.s32 128, 128
          %193 = vsyncadd %s187, %s192
          %s194 = smul.addr %s27, 2
          %s195 = smul.addr %s194, 64
          %s196 = scalar_lea.hbm %s0, %s195
          %s197 = sshll.u32 %s190, 4
          %s198 = int_to_ptr.vmem [resolvable:$true] %s197
          %203 = dma.hbm_to_vmem [thread:$0]  %s196, 128, %s198, %s187, 64, 64, 4
        $region24: #{prior_aligned_injector.3} parent=19 // pred_fallthru
          _
        // Predicated region
        $region25: #{prior_aligned_injector.3} parent=19 // pred_check
          %p204 = pneg %p78
        $region26: #{prior_aligned_injector.3} parent=19 // pred_check_branch
          %206 = sbr.rel (%p204) target = $region28
        $region27: #{prior_aligned_injector.3} parent=19 // pred_region
          %s207 = sand.u32 %s20, 1
          %s208 = scalar_lea.sflag [#allocation7], %s207
          %s209 = sand.u32 %s68, 1
          %s210 = smul.addr %s209, 32
          %s211 = scalar_lea.vmem [#allocation6], %s210
          %s212 = smul.u32 8, %s28
          %s214 = ssub.s32 512, 512
          %215 = vsyncadd %s208, %s214
          %s216 = smul.addr %s212, 64
          %s217 = scalar_lea.hbm %s1, %s216
          %s218 = sshll.u32 %s211, 4
          %s219 = int_to_ptr.vmem [resolvable:$true] %s218
          %224 = dma.hbm_to_vmem [thread:$0]  %s217, 512, %s219, %s208, 64, 64, 4
        $region28: #{prior_aligned_injector.3} parent=19 // pred_fallthru
          _
        // Predicated region
        $region29: #{prior_aligned_injector.3} parent=19 // pred_check
          %p225 = pneg %p106
        $region30: #{prior_aligned_injector.3} parent=19 // pred_check_branch
          %227 = sbr.rel (%p225) target = $region32
        $region31: #{prior_aligned_injector.3} parent=19 // pred_region
          %s228 = sand.u32 %s20, 1
          %s229 = scalar_lea.sflag [#allocation7], %s228
          %s230 = sand.u32 %s96, 1
          %s231 = smul.addr %s230, 64
          %s232 = scalar_lea.vmem [#allocation8], %s231
          %s233 = smul.u32 8, %s28
          %s235 = ssub.s32 1024, 1024
          %236 = vsyncadd %s229, %s235
          %s237 = smul.addr %s27, 32
          %s238 = sadd.s32 %s233, %s237
          %s239 = smul.addr %s238, 128
          %s240 = scalar_lea.hbm %s2, %s239
          %s241 = sshll.u32 %s232, 4
          %s242 = int_to_ptr.vmem [resolvable:$true] %s241
          %247 = dma.hbm_to_vmem [thread:$0]  %s240, 1024, %s242, %s229, 128, 128, 8
        $region32: #{prior_aligned_injector.3} parent=19 // pred_fallthru
          _
      $region20: #{prior_aligned_injector.3} parent=5 // pred_fallthru
        _
      %p248 = scmp.le.s32.totalorder 1, %s20
      %p249 = scmp.lt.s32.totalorder %s20, 9
      %p250 = pnand %p248, %p249
      %p251 = pneg %p250
      // Predicated region
      $region33: #{prior_aligned_injector.3} parent=5 // pred_check
        _
      $region34: #{prior_aligned_injector.3} parent=5 // pred_check_branch
        %253 = sbr.rel (%p250) target = $region36
      $region35: #{prior_aligned_injector.3} parent=5 // pred_region
        %s254 = ssub.s32 %s20, 1
        %s255 = sand.u32 %s45, 1
        %s256 = scalar_lea.sflag [#allocation4], %s255
        %s257 = sand.u32 %s45, 1
        %s258 = smul.addr %s257, 8
        %s259 = scalar_lea.vmem [#allocation3], %s258
        // Predicated region
        $region37: #{prior_aligned_injector.3} parent=35 // pred_check
          %p260 = pneg %p58
        $region38: #{prior_aligned_injector.3} parent=35 // pred_check_branch
          %262 = sbr.rel (%p260) target = $region40
        $region39: #{prior_aligned_injector.3} parent=35 // pred_region
          %263 = dma.done %s256, 128
        $region40: #{prior_aligned_injector.3} parent=35 // pred_fallthru
          _
        %s264 = sand.u32 %s25, 1
        %s265 = scalar_lea.sflag [#allocation7], %s264
        %s266 = sand.u32 %s71, 1
        %s267 = smul.addr %s266, 32
        %s268 = scalar_lea.vmem [#allocation6], %s267
        // Predicated region
        $region41: #{prior_aligned_injector.3} parent=35 // pred_check
          %p269 = pneg %p84
        $region42: #{prior_aligned_injector.3} parent=35 // pred_check_branch
          %271 = sbr.rel (%p269) target = $region44
        $region43: #{prior_aligned_injector.3} parent=35 // pred_region
          %272 = dma.done %s265, 512
        $region44: #{prior_aligned_injector.3} parent=35 // pred_fallthru
          _
        %s273 = sand.u32 %s25, 1
        %s274 = scalar_lea.sflag [#allocation7], %s273
        %s275 = sand.u32 %s99, 1
        %s276 = smul.addr %s275, 64
        %s277 = scalar_lea.vmem [#allocation8], %s276
        // Predicated region
        $region45: #{prior_aligned_injector.3} parent=35 // pred_check
          %p278 = pneg %p112
        $region46: #{prior_aligned_injector.3} parent=35 // pred_check_branch
          %280 = sbr.rel (%p278) target = $region48
        $region47: #{prior_aligned_injector.3} parent=35 // pred_region
          %281 = dma.done %s274, 1024
        $region48: #{prior_aligned_injector.3} parent=35 // pred_fallthru
          _
        %s282 = sand.u32 %s45, 1
        %s283 = scalar_lea.sflag [#allocation4], %s282
        %s284 = sand.u32 %s45, 1
        %s285 = smul.addr %s284, 8
        %s286 = scalar_lea.vmem [#allocation3], %s285
        %p287 = pneg %p58
        %p288 = pneg %p55
        %s289 = sand.u32 %s25, 1
        %s290 = scalar_lea.sflag [#allocation7], %s289
        %s291 = sand.u32 %s71, 1
        %s292 = smul.addr %s291, 32
        %s293 = scalar_lea.vmem [#allocation6], %s292
        %p294 = pneg %p84
        %p295 = pneg %p81
        %s296 = sand.u32 %s25, 1
        %s297 = scalar_lea.sflag [#allocation7], %s296
        %s298 = sand.u32 %s99, 1
        %s299 = smul.addr %s298, 64
        %s300 = scalar_lea.vmem [#allocation8], %s299
        %p301 = pneg %p112
        %p302 = pneg %p109
        %p303 = pneg %p133
        %p304 = pneg %p130
        %p305 = pneg %p161
        %p306 = pneg %p158
        %s307 = sand.u32 %s148, 1
        %s308 = scalar_lea.sflag [#allocation5], %s307
        %s309 = sand.u32 %s148, 1
        %s310 = smul.addr %s309, 64
        %s311 = scalar_lea.vmem [#allocation9], %s310
        %s312 = smul.u32 8, %s30
        %s313 = smul.u32 8, %s30
        %s314 = smul.u32 8, %s30
        %v316 = vld [vmem:[%s268] sm:$0xf]
        %v317 = vld [vmem:[%s268 + $0x4] sm:$0xf]
        %v318 = vld [vmem:[%s268 + $0x8] sm:$0xf]
        %v319 = vld [vmem:[%s268 + $0xc] sm:$0xf]
        %v320 = vld [vmem:[%s268 + $0x10] sm:$0xf]
        %v321 = vld [vmem:[%s268 + $0x14] sm:$0xf]
        %v322 = vld [vmem:[%s268 + $0x18] sm:$0xf]
        %v323 = vld [vmem:[%s268 + $0x1c] sm:$0xf]
        %v324 = vld [vmem:[%s259] sm:$0xf]
        %v325 = vld [vmem:[%s259 + $0x4] sm:$0xf]
        %v334 = vunpack.c.l.b16 %v316
        %v335 = vunpack.c.l.b16 %v317
        %v336 = vunpack.c.l.b16 %v318
        %v337 = vunpack.c.l.b16 %v319
        %v338 = vunpack.c.l.b16 %v320
        %v339 = vunpack.c.l.b16 %v321
        %v340 = vunpack.c.l.b16 %v322
        %v341 = vunpack.c.l.b16 %v323
        %v342 = vpack.c.b16 %v335, %v334
        %v343 = vpack.c.b16 %v337, %v336
        %v344 = vpack.c.b16 %v339, %v338
        %v345 = vpack.c.b16 %v341, %v340
        %v348 = vunpack.c.l.b16 %v324
        %v349 = vunpack.c.l.b16 %v325
        %v350 = vpack.c.b16 %v349, %v348
        %vm352 = vcmask 130048
        %v354 = vsel %vm352, %v342, 0
        %v357 = vsel %vm352, %v343, 0
        %v360 = vsel %vm352, %v344, 0
        %v363 = vsel %vm352, %v345, 0
        %365 = vmatprep.subr.bf16.mxu0 0
        %366 = vmatpush1.bf16.msra.mxu0 %v350
        %367 = vmatprep.subr.bf16.mxu0 0
        %368 = vmatpush1.bf16.msra.mxu0 0
        %369 = vmatprep.subr.bf16.mxu0 0
        %370 = vmatpush1.bf16.msra.mxu0 0
        %371 = vmatprep.subr.bf16.mxu0 0
        %372 = vmatpush1.bf16.msra.mxu0 0
        %373 = vmatprep.subr.bf16.mxu0 0
        %374 = vmatpush1.bf16.msra.mxu0 0
        %375 = vmatprep.subr.bf16.mxu0 0
        %376 = vmatpush1.bf16.msra.mxu0 0
        %377 = vmatprep.subr.bf16.mxu0 0
        %378 = vmatpush1.bf16.msra.mxu0 0
        %379 = vmatprep.subr.bf16.mxu0 0
        %380 = vmatpush1.bf16.msra.mxu0 0
        %381 = vmatprep.subr.bf16.mxu0 0
        %382 = vmatpush1.bf16.msra.mxu0 0
        %383 = vmatprep.subr.bf16.mxu0 0
        %384 = vmatpush1.bf16.msra.mxu0 0
        %385 = vmatprep.subr.bf16.mxu0 0
        %386 = vmatpush1.bf16.msra.mxu0 0
        %387 = vmatprep.subr.bf16.mxu0 0
        %388 = vmatpush1.bf16.msra.mxu0 0
        %389 = vmatprep.subr.bf16.mxu0 0
        %390 = vmatpush1.bf16.msra.mxu0 0
        %391 = vmatprep.subr.bf16.mxu0 0
        %392 = vmatpush1.bf16.msra.mxu0 0
        %393 = vmatprep.subr.bf16.mxu0 0
        %394 = vmatpush1.bf16.msra.mxu0 0
        %395 = vmatprep.subr.bf16.mxu0 0
        %396 = vmatpush1.bf16.msra.mxu0 0
        %397 = vmatprep.mubr.bf16.mxu0 0
        %398 = vmatmul.mubr.bf16.gmra.mrb[0].mxu0 %v354
        %v399 = vpop.f32.mrb[0].mxu0
        %v400 = vadd.f32 0.0, %v399
        %v401 = vpop.f32.mrb[0].mxu0
        %v402 = vpop.f32.mrb[0].mxu0
        %v403 = vadd.f32 0.0, %v402
        %v404 = vpop.f32.mrb[0].mxu0
        %405 = vmatprep.mubr.bf16.mxu0 0
        %406 = vmatmul.mubr.bf16.gmra.mrb[0].mxu0 %v357
        %v407 = vpop.f32.mrb[0].mxu0
        %v408 = vadd.f32 0.0, %v407
        %v409 = vpop.f32.mrb[0].mxu0
        %v410 = vpop.f32.mrb[0].mxu0
        %v411 = vadd.f32 0.0, %v410
        %v412 = vpop.f32.mrb[0].mxu0
        %413 = vmatprep.mubr.bf16.mxu0 0
        %414 = vmatmul.mubr.bf16.gmra.mrb[0].mxu0 %v360
        %v415 = vpop.f32.mrb[0].mxu0
        %v416 = vadd.f32 0.0, %v415
        %v417 = vpop.f32.mrb[0].mxu0
        %v418 = vpop.f32.mrb[0].mxu0
        %v419 = vadd.f32 0.0, %v418
        %v420 = vpop.f32.mrb[0].mxu0
        %421 = vmatprep.mubr.bf16.mxu0 0
        %422 = vmatmul.mubr.bf16.gmra.mrb[0].mxu0 %v363
        %v423 = vpop.f32.mrb[0].mxu0
        %v424 = vadd.f32 0.0, %v423
        %v425 = vpop.f32.mrb[0].mxu0
        %v426 = vpop.f32.mrb[0].mxu0
        %v427 = vadd.f32 0.0, %v426
        %v428 = vpop.f32.mrb[0].mxu0
        %429 = vdwg.mxu0
        %s430 = sld [smem:[#allocation2]]
        %v431 = vstv %s430
        %v432 = vmul.f32 %v431, %v400
        %v433 = vmul.f32 %v431, %v403
        %v434 = vmul.f32 %v431, %v408
        %v435 = vmul.f32 %v431, %v411
        %v436 = vmul.f32 %v431, %v416
        %v437 = vmul.f32 %v431, %v419
        %v438 = vmul.f32 %v431, %v424
        %v439 = vmul.f32 %v431, %v427
        %v440 = vld [vmem:[%s277] sm:$0xff]
        %v441 = vld [vmem:[%s277 + $0x8] sm:$0xff]
        %v442 = vld [vmem:[%s277 + $0x10] sm:$0xff]
        %v443 = vld [vmem:[%s277 + $0x18] sm:$0xff]
        %v444 = vld [vmem:[%s277 + $0x20] sm:$0xff]
        %v445 = vld [vmem:[%s277 + $0x28] sm:$0xff]
        %v446 = vld [vmem:[%s277 + $0x30] sm:$0xff]
        %v447 = vld [vmem:[%s277 + $0x38] sm:$0xff]
        %v448 = vadd.f32 %v432, %v440
        %v449 = vadd.f32 %v433, %v441
        %v450 = vadd.f32 %v434, %v442
        %v451 = vadd.f32 %v435, %v443
        %v452 = vadd.f32 %v436, %v444
        %v453 = vadd.f32 %v437, %v445
        %v454 = vadd.f32 %v438, %v446
        %v455 = vadd.f32 %v439, %v447
        %456 = vst [vmem:[%s311] sm:$0xff] %v448
        %457 = vst [vmem:[%s311 + $0x8] sm:$0xff] %v449
        %458 = vst [vmem:[%s311 + $0x10] sm:$0xff] %v450
        %459 = vst [vmem:[%s311 + $0x18] sm:$0xff] %v451
        %460 = vst [vmem:[%s311 + $0x20] sm:$0xff] %v452
        %461 = vst [vmem:[%s311 + $0x28] sm:$0xff] %v453
        %462 = vst [vmem:[%s311 + $0x30] sm:$0xff] %v454
        %463 = vst [vmem:[%s311 + $0x38] sm:$0xff] %v455
        %s464 = sand.u32 %s148, 1
        %s465 = scalar_lea.sflag [#allocation5], %s464
        %s466 = sand.u32 %s148, 1
        %s467 = smul.addr %s466, 64
        %s468 = scalar_lea.vmem [#allocation9], %s467
        // Predicated region
        $region49: #{prior_aligned_injector.3} parent=35 // pred_check
          %p469 = pneg %p158
        $region50: #{prior_aligned_injector.3} parent=35 // pred_check_branch
          %471 = sbr.rel (%p469) target = $region52
        $region51: #{prior_aligned_injector.3} parent=35 // pred_region
          %s472 = smul.u32 8, %s30
          %s474 = ssub.s32 1024, 1024
          %475 = vsyncadd %s465, %s474
          %s476 = smul.addr %s29, 32
          %s477 = sadd.s32 %s472, %s476
          %s478 = smul.addr %s477, 128
          %s479 = scalar_lea.hbm %s4, %s478
          %s480 = sshll.u32 %s468, 4
          %s481 = int_to_ptr.vmem [resolvable:$true] %s480
          %486 = dma.vmem_to_hbm [thread:$0]  %s481, 1024, %s479, %s465, 128, 128, 8
        $region52: #{prior_aligned_injector.3} parent=35 // pred_fallthru
          _
      $region36: #{prior_aligned_injector.3} parent=5 // pred_fallthru
        _
      %p487 = scmp.le.s32.totalorder 2, %s20
      // Predicated region
      $region53: #{prior_aligned_injector.3} parent=5 // pred_check
        %p488 = pneg %p487
      $region54: #{prior_aligned_injector.3} parent=5 // pred_check_branch
        %490 = sbr.rel (%p488) target = $region56
      $region55: #{prior_aligned_injector.3} parent=5 // pred_region
        %s491 = ssub.s32 %s20, 2
        // Predicated region
        $region57: #{prior_aligned_injector.3} parent=55 // pred_check
          %p492 = pneg %p164
        $region58: #{prior_aligned_injector.3} parent=55 // pred_check_branch
          %494 = sbr.rel (%p492) target = $region60
        $region59: #{prior_aligned_injector.3} parent=55 // pred_region
          %s495 = sand.u32 %s149, 1
          %s496 = scalar_lea.sflag [#allocation5], %s495
          %s497 = sand.u32 %s149, 1
          %s498 = smul.addr %s497, 64
          %s499 = scalar_lea.vmem [#allocation9], %s498
          %500 = dma.done %s496, 1024
        $region60: #{prior_aligned_injector.3} parent=55 // pred_fallthru
          _
      $region56: #{prior_aligned_injector.3} parent=5 // pred_fallthru
        _
    $region6: #{prior_aligned_injector.3} parent=1 // loop_footer
      %s24 = sadd.s32 1, %s20
    $region7: #{prior_aligned_injector.3} parent=1 // loop_footer_branch
      %19 = sbr.rel target = $region3
    $region8: #{prior_aligned_injector.3} parent=1 // loop_exit
      _
    %501 = vsyncpa [#allocation4], 1
    %s502 = scalar_lea.sflag [#allocation4], 1
    %503 = vsyncpa %s502, 1
    %504 = vsyncpa [#allocation7], 1
    %s505 = scalar_lea.sflag [#allocation7], 1
    %506 = vsyncpa %s505, 1
    %507 = vsyncpa [#allocation5], 1
    %s508 = scalar_lea.sflag [#allocation5], 1
    %509 = vsyncpa %s508, 1

// kernel: prior_aligned_injector.2
$region0: #{prior_aligned_injector.2}
  #allocation0 [shape = 'u32[]', space=smem, size = 0x4, offset = 0x4, fixed_abs, tag = 'smem constant byte address 0x4 - core index']
  #allocation1 [shape = 'u32[144,128]{1,0:T(1,128)}', space=vmem, size = 0x12000, scoped, tag = 'internal scratch']
  %s0 = inlined_call_operand.hbm [shape: f32[2,16,128], index: 0, kind: input, shape index: {}]
  %s1 = inlined_call_operand.hbm [shape: f32[2,16,128], index: 1, kind: input, shape index: {}]
  %s2 = inlined_call_operand.hbm [shape: bf16[128,128], index: 2, kind: input, shape index: {}]
  %s3 = inlined_call_operand.hbm [shape: f32[1,128], index: 3, kind: input, shape index: {}]
  %s4 = inlined_call_operand.hbm [shape: bf16[128,256], index: 4, kind: input, shape index: {}]
  %s5 = inlined_call_operand.hbm [shape: f32[1,256], index: 5, kind: input, shape index: {}]
  %s6 = inlined_call_operand.hbm [shape: bf16[2,16,128], index: 6, kind: output, shape index: {}]
  %s7 = sld [smem:[#allocation0]]
  $region81: #{prior_aligned_injector.2} parent=0
    _
  %s9 = ssub.s32 1, %s7
  %s10 = scalar_select 0, %s9, %s7
  $region1: #{prior_aligned_injector.2} parent=0
    #allocation2 [shape = 'u8[16384]{0}', space=vmem, size = 0x4000, scoped, tag = 'input window, operand 0']
    #allocation3 [shape = 's32[2]{0}', space=sflag, size = 0x8, scoped, tag = 'scoped memory for prior_aligned_injector.2']
    #allocation4 [shape = 's32[2]{0}', space=sflag, size = 0x8, scoped, tag = 'scoped memory for prior_aligned_injector.2']
    #allocation5 [shape = 'u8[16384]{0}', space=vmem, size = 0x4000, scoped, tag = 'input window, operand 1']
    #allocation6 [shape = 's32[2]{0}', space=sflag, size = 0x8, scoped, tag = 'scoped memory for prior_aligned_injector.2']
    #allocation7 [shape = 'u8[32768]{0}', space=vmem, size = 0x8000, scoped, tag = 'input window, operand 2, single buffered']
    #allocation8 [shape = 'u8[512]{0}', space=vmem, size = 0x400, scoped, tag = 'input window, operand 3, single buffered']
    #allocation9 [shape = 's32[1]{0}', space=sflag, size = 0x4, scoped, tag = 'scoped memory for prior_aligned_injector.2']
    #allocation10 [shape = 'u8[65536]{0}', space=vmem, size = 0x10000, scoped, tag = 'input window, operand 4, single buffered']
    #allocation11 [shape = 'u8[1024]{0}', space=vmem, size = 0x400, scoped, tag = 'input window, operand 5, single buffered']
    #allocation12 [shape = 's32[1]{0}', space=sflag, size = 0x4, scoped, tag = 'scoped memory for prior_aligned_injector.2']
    #allocation13 [shape = 'u8[8192]{0}', space=vmem, size = 0x2000, scoped, tag = 'output window, operand 0']
    %11 = vsyncpa [#allocation3], 0
    %s12 = scalar_lea.sflag [#allocation3], 1
    %13 = vsyncpa %s12, 0
    %14 = vsyncpa [#allocation6], 0
    %s15 = scalar_lea.sflag [#allocation6], 1
    %16 = vsyncpa %s15, 0
    %17 = vsyncpa [#allocation9], 0
    %18 = vsyncpa [#allocation12], 0
    %19 = vsyncpa [#allocation4], 0
    %s20 = scalar_lea.sflag [#allocation4], 1
    %21 = vsyncpa %s20, 0
    loop: start=0, step=1, limit=4
    $region2: #{prior_aligned_injector.2} parent=1 // loop_pre_header
      _
    $region3: #{prior_aligned_injector.2} parent=1 // loop_header
      %s23 = sphi 0, %s27
      %p24 = scmp.ge.s32.totalorder %s23, 4
      %s33 = sphi 0, %s35
      %s36 = sphi 0, %s33
      %s37 = sphi 0, %s36
      %s53 = sphi 0, %s37
      %s59 = sphi 0, %s61
      %s62 = sphi 0, %s59
      %s63 = sphi 0, %s62
      %s79 = sphi 0, %s63
      %s83 = sphi 0, %s83
      %s85 = sphi 0, %s83
      %s86 = sphi 0, %s85
      %s100 = sphi 0, %s86
      %s104 = sphi 0, %s104
      %s106 = sphi 0, %s104
      %s107 = sphi 0, %s106
      %s121 = sphi 0, %s107
      %s125 = sphi 0, %s125
      %s127 = sphi 0, %s125
      %s128 = sphi 0, %s127
      %s142 = sphi 0, %s128
      %s146 = sphi 0, %s146
      %s148 = sphi 0, %s146
      %s149 = sphi 0, %s148
      %s163 = sphi 0, %s149
      %s169 = sphi 0, %s171
      %s172 = sphi 0, %s169
      %s173 = sphi 0, %s172
      %s189 = sphi 0, %s173
    $region4: #{prior_aligned_injector.2} parent=1 // loop_header_branch
      %26 = sbr.rel (%p24) target = $region8
    $region5: #{prior_aligned_injector.2} parent=1 // loop_body
      %s28 = ssub.s32 %s23, 1
      %s29 = ssub.s32 %s23, 2
      %s30 = sadd.s32 %s23, 1
      %s31 = ssub.s32 %s23, %s30
      %p32 = scmp.eq.s32.totalorder %s31, 0
      %s34 = sadd.s32 %s33, 1
      %s35 = scalar_select %p32, %s33, %s34
      %p38 = pneg %p32
      %p39 = scmp.eq.s32.totalorder %s23, 1
      %p40 = por %p38, %p39
      %p41 = scmp.ne.s32.totalorder %s33, %s36
      %p42 = scmp.eq.s32.totalorder %s23, 0
      %p43 = por %p41, %p42
      %p44 = scmp.ne.s32.totalorder %s33, %s36
      %p45 = scmp.eq.s32.totalorder %s28, 1
      %p46 = por %p44, %p45
      %p47 = scmp.ne.s32.totalorder %s36, %s37
      %p48 = scmp.eq.s32.totalorder %s28, 0
      %p49 = por %p47, %p48
      %p50 = scmp.ne.s32.totalorder %s36, %s37
      %p51 = scmp.eq.s32.totalorder %s29, 1
      %p52 = por %p50, %p51
      %p54 = scmp.ne.s32.totalorder %s37, %s53
      %p55 = scmp.eq.s32.totalorder %s29, 0
      %p56 = por %p54, %p55
      %s57 = ssub.s32 %s23, %s30
      %p58 = scmp.eq.s32.totalorder %s57, 0
      %s60 = sadd.s32 %s59, 1
      %s61 = scalar_select %p58, %s59, %s60
      %p64 = pneg %p58
      %p65 = scmp.eq.s32.totalorder %s23, 1
      %p66 = por %p64, %p65
      %p67 = scmp.ne.s32.totalorder %s59, %s62
      %p68 = scmp.eq.s32.totalorder %s23, 0
      %p69 = por %p67, %p68
      %p70 = scmp.ne.s32.totalorder %s59, %s62
      %p71 = scmp.eq.s32.totalorder %s28, 1
      %p72 = por %p70, %p71
      %p73 = scmp.ne.s32.totalorder %s62, %s63
      %p74 = scmp.eq.s32.totalorder %s28, 0
      %p75 = por %p73, %p74
      %p76 = scmp.ne.s32.totalorder %s62, %s63
      %p77 = scmp.eq.s32.totalorder %s29, 1
      %p78 = por %p76, %p77
      %p80 = scmp.ne.s32.totalorder %s63, %s79
      %p81 = scmp.eq.s32.totalorder %s29, 0
      %p82 = por %p80, %p81
      %s84 = sadd.s32 %s83, 1
      %p87 = scmp.eq.s32.totalorder %s23, 1
      %p88 = scmp.ne.s32.totalorder %s83, %s85
      %p89 = scmp.eq.s32.totalorder %s23, 0
      %p90 = por %p88, %p89
      %p91 = scmp.ne.s32.totalorder %s83, %s85
      %p92 = scmp.eq.s32.totalorder %s28, 1
      %p93 = por %p91, %p92
      %p94 = scmp.ne.s32.totalorder %s85, %s86
      %p95 = scmp.eq.s32.totalorder %s28, 0
      %p96 = por %p94, %p95
      %p97 = scmp.ne.s32.totalorder %s85, %s86
      %p98 = scmp.eq.s32.totalorder %s29, 1
      %p99 = por %p97, %p98
      %p101 = scmp.ne.s32.totalorder %s86, %s100
      %p102 = scmp.eq.s32.totalorder %s29, 0
      %p103 = por %p101, %p102
      %s105 = sadd.s32 %s104, 1
      %p108 = scmp.eq.s32.totalorder %s23, 1
      %p109 = scmp.ne.s32.totalorder %s104, %s106
      %p110 = scmp.eq.s32.totalorder %s23, 0
      %p111 = por %p109, %p110
      %p112 = scmp.ne.s32.totalorder %s104, %s106
      %p113 = scmp.eq.s32.totalorder %s28, 1
      %p114 = por %p112, %p113
      %p115 = scmp.ne.s32.totalorder %s106, %s107
      %p116 = scmp.eq.s32.totalorder %s28, 0
      %p117 = por %p115, %p116
      %p118 = scmp.ne.s32.totalorder %s106, %s107
      %p119 = scmp.eq.s32.totalorder %s29, 1
      %p120 = por %p118, %p119
      %p122 = scmp.ne.s32.totalorder %s107, %s121
      %p123 = scmp.eq.s32.totalorder %s29, 0
      %p124 = por %p122, %p123
      %s126 = sadd.s32 %s125, 1
      %p129 = scmp.eq.s32.totalorder %s23, 1
      %p130 = scmp.ne.s32.totalorder %s125, %s127
      %p131 = scmp.eq.s32.totalorder %s23, 0
      %p132 = por %p130, %p131
      %p133 = scmp.ne.s32.totalorder %s125, %s127
      %p134 = scmp.eq.s32.totalorder %s28, 1
      %p135 = por %p133, %p134
      %p136 = scmp.ne.s32.totalorder %s127, %s128
      %p137 = scmp.eq.s32.totalorder %s28, 0
      %p138 = por %p136, %p137
      %p139 = scmp.ne.s32.totalorder %s127, %s128
      %p140 = scmp.eq.s32.totalorder %s29, 1
      %p141 = por %p139, %p140
      %p143 = scmp.ne.s32.totalorder %s128, %s142
      %p144 = scmp.eq.s32.totalorder %s29, 0
      %p145 = por %p143, %p144
      %s147 = sadd.s32 %s146, 1
      %p150 = scmp.eq.s32.totalorder %s23, 1
      %p151 = scmp.ne.s32.totalorder %s146, %s148
      %p152 = scmp.eq.s32.totalorder %s23, 0
      %p153 = por %p151, %p152
      %p154 = scmp.ne.s32.totalorder %s146, %s148
      %p155 = scmp.eq.s32.totalorder %s28, 1
      %p156 = por %p154, %p155
      %p157 = scmp.ne.s32.totalorder %s148, %s149
      %p158 = scmp.eq.s32.totalorder %s28, 0
      %p159 = por %p157, %p158
      %p160 = scmp.ne.s32.totalorder %s148, %s149
      %p161 = scmp.eq.s32.totalorder %s29, 1
      %p162 = por %p160, %p161
      %p164 = scmp.ne.s32.totalorder %s149, %s163
      %p165 = scmp.eq.s32.totalorder %s29, 0
      %p166 = por %p164, %p165
      %s167 = ssub.s32 %s23, %s30
      %p168 = scmp.eq.s32.totalorder %s167, 0
      %s170 = sadd.s32 %s169, 1
      %s171 = scalar_select %p168, %s169, %s170
      %p174 = pneg %p168
      %p175 = scmp.eq.s32.totalorder %s23, 1
      %p176 = por %p174, %p175
      %p177 = scmp.ne.s32.totalorder %s169, %s172
      %p178 = scmp.eq.s32.totalorder %s23, 0
      %p179 = por %p177, %p178
      %p180 = scmp.ne.s32.totalorder %s169, %s172
      %p181 = scmp.eq.s32.totalorder %s28, 1
      %p182 = por %p180, %p181
      %p183 = scmp.ne.s32.totalorder %s172, %s173
      %p184 = scmp.eq.s32.totalorder %s28, 0
      %p185 = por %p183, %p184
      %p186 = scmp.ne.s32.totalorder %s172, %s173
      %p187 = scmp.eq.s32.totalorder %s29, 1
      %p188 = por %p186, %p187
      %p190 = scmp.ne.s32.totalorder %s173, %s189
      %p191 = scmp.eq.s32.totalorder %s29, 0
      %p192 = por %p190, %p191
      %p193 = scmp.le.s32.totalorder 1, %s23
      %p194 = scmp.lt.s32.totalorder %s23, 3
      %p195 = pnand %p193, %p194
      %p196 = pneg %p195
      // Predicated region
      $region9: #{prior_aligned_injector.2} parent=5 // pred_check
        _
      $region10: #{prior_aligned_injector.2} parent=5 // pred_check_branch
        %198 = sbr.rel (%p195) target = $region12
      $region11: #{prior_aligned_injector.2} parent=5 // pred_region
        %s199 = ssub.s32 %s23, 1
        // Predicated region
        $region13: #{prior_aligned_injector.2} parent=11 // pred_check
          %p200 = pneg %p96
        $region14: #{prior_aligned_injector.2} parent=11 // pred_check_branch
          %202 = sbr.rel (%p200) target = $region16
        $region15: #{prior_aligned_injector.2} parent=11 // pred_region
          %s204 = ssub.s32 1024, 1024
          %205 = vsyncadd [#allocation6], %s204
          %s206 = sshll.u32 [#allocation7], 4
          %s207 = int_to_ptr.vmem [resolvable:$true] %s206
          %212 = dma.hbm_to_vmem [thread:$0]  %s2, 1024, %s207, [#allocation6], 64, 64, 4
        $region16: #{prior_aligned_injector.2} parent=11 // pred_fallthru
          _
        // Predicated region
        $region17: #{prior_aligned_injector.2} parent=11 // pred_check
          %p213 = pneg %p117
        $region18: #{prior_aligned_injector.2} parent=11 // pred_check_branch
          %215 = sbr.rel (%p213) target = $region20
        $region19: #{prior_aligned_injector.2} parent=11 // pred_region
          %s217 = ssub.s32 16, 16
          %218 = vsyncadd [#allocation9], %s217
          %s220 = sshll.u32 [#allocation8], 4
          %s221 = int_to_ptr.vmem [resolvable:$true] %s220
          %223 = dma.hbm_to_vmem [thread:$0]  %s3, 16, %s221, [#allocation9]
        $region20: #{prior_aligned_injector.2} parent=11 // pred_fallthru
          _
        // Predicated region
        $region21: #{prior_aligned_injector.2} parent=11 // pred_check
          %p224 = pneg %p138
        $region22: #{prior_aligned_injector.2} parent=11 // pred_check_branch
          %226 = sbr.rel (%p224) target = $region24
        $region23: #{prior_aligned_injector.2} parent=11 // pred_region
          %s228 = ssub.s32 2048, 2048
          %229 = vsyncadd [#allocation9], %s228
          %s230 = sshll.u32 [#allocation10], 4
          %s231 = int_to_ptr.vmem [resolvable:$true] %s230
          %236 = dma.hbm_to_vmem [thread:$0]  %s4, 2048, %s231, [#allocation9], 128, 128, 8
        $region24: #{prior_aligned_injector.2} parent=11 // pred_fallthru
          _
        // Predicated region
        $region25: #{prior_aligned_injector.2} parent=11 // pred_check
          %p237 = pneg %p159
        $region26: #{prior_aligned_injector.2} parent=11 // pred_check_branch
          %239 = sbr.rel (%p237) target = $region28
        $region27: #{prior_aligned_injector.2} parent=11 // pred_region
          %s241 = ssub.s32 32, 32
          %242 = vsyncadd [#allocation12], %s241
          %s244 = sshll.u32 [#allocation11], 4
          %s245 = int_to_ptr.vmem [resolvable:$true] %s244
          %247 = dma.hbm_to_vmem [thread:$0]  %s5, 32, %s245, [#allocation12]
        $region28: #{prior_aligned_injector.2} parent=11 // pred_fallthru
          _
      $region12: #{prior_aligned_injector.2} parent=5 // pred_fallthru
        _
      %p248 = scmp.lt.s32.totalorder %s23, 2
      // Predicated region
      $region29: #{prior_aligned_injector.2} parent=5 // pred_check
        %p249 = pneg %p248
      $region30: #{prior_aligned_injector.2} parent=5 // pred_check_branch
        %251 = sbr.rel (%p249) target = $region32
      $region31: #{prior_aligned_injector.2} parent=5 // pred_region
        // Predicated region
        $region33: #{prior_aligned_injector.2} parent=31 // pred_check
          %p252 = pneg %p43
        $region34: #{prior_aligned_injector.2} parent=31 // pred_check_branch
          %254 = sbr.rel (%p252) target = $region36
        $region35: #{prior_aligned_injector.2} parent=31 // pred_region
          %s255 = sand.u32 %s33, 1
          %s256 = scalar_lea.sflag [#allocation3], %s255
          %s257 = sand.u32 %s33, 1
          %s258 = smul.addr %s257, 16
          %s259 = scalar_lea.vmem [#allocation2], %s258
          %s261 = ssub.s32 256, 256
          %262 = vsyncadd %s256, %s261
          %s263 = smul.addr %s23, 2
          %s264 = smul.addr %s263, 128
          %s265 = scalar_lea.hbm %s0, %s264
          %s266 = sshll.u32 %s259, 4
          %s267 = int_to_ptr.vmem [resolvable:$true] %s266
          %272 = dma.hbm_to_vmem [thread:$0]  %s265, 256, %s267, %s256, 128, 128, 8
        $region36: #{prior_aligned_injector.2} parent=31 // pred_fallthru
          _
        // Predicated region
        $region37: #{prior_aligned_injector.2} parent=31 // pred_check
          %p273 = pneg %p69
        $region38: #{prior_aligned_injector.2} parent=31 // pred_check_branch
          %275 = sbr.rel (%p273) target = $region40
        $region39: #{prior_aligned_injector.2} parent=31 // pred_region
          %s276 = sand.u32 %s23, 1
          %s277 = scalar_lea.sflag [#allocation6], %s276
          %s278 = sand.u32 %s59, 1
          %s279 = smul.addr %s278, 16
          %s280 = scalar_lea.vmem [#allocation5], %s279
          %s282 = ssub.s32 256, 256
          %283 = vsyncadd %s277, %s282
          %s284 = smul.addr %s23, 2
          %s285 = smul.addr %s284, 128
          %s286 = scalar_lea.hbm %s1, %s285
          %s287 = sshll.u32 %s280, 4
          %s288 = int_to_ptr.vmem [resolvable:$true] %s287
          %293 = dma.hbm_to_vmem [thread:$0]  %s286, 256, %s288, %s277, 128, 128, 8
        $region40: #{prior_aligned_injector.2} parent=31 // pred_fallthru
          _
      $region32: #{prior_aligned_injector.2} parent=5 // pred_fallthru
        _
      %p294 = scmp.le.s32.totalorder 1, %s23
      %p295 = scmp.lt.s32.totalorder %s23, 3
      %p296 = pnand %p294, %p295
      %p297 = pneg %p296
      // Predicated region
      $region41: #{prior_aligned_injector.2} parent=5 // pred_check
        _
      $region42: #{prior_aligned_injector.2} parent=5 // pred_check_branch
        %299 = sbr.rel (%p296) target = $region44
      $region43: #{prior_aligned_injector.2} parent=5 // pred_region
        %s300 = ssub.s32 %s23, 1
        %s301 = sand.u32 %s36, 1
        %s302 = scalar_lea.sflag [#allocation3], %s301
        %s303 = sand.u32 %s36, 1
        %s304 = smul.addr %s303, 16
        %s305 = scalar_lea.vmem [#allocation2], %s304
        // Predicated region
        $region45: #{prior_aligned_injector.2} parent=43 // pred_check
          %p306 = pneg %p49
        $region46: #{prior_aligned_injector.2} parent=43 // pred_check_branch
          %308 = sbr.rel (%p306) target = $region48
        $region47: #{prior_aligned_injector.2} parent=43 // pred_region
          %309 = dma.done %s302, 256
        $region48: #{prior_aligned_injector.2} parent=43 // pred_fallthru
          _
        %s310 = sand.u32 %s28, 1
        %s311 = scalar_lea.sflag [#allocation6], %s310
        %s312 = sand.u32 %s62, 1
        %s313 = smul.addr %s312, 16
        %s314 = scalar_lea.vmem [#allocation5], %s313
        // Predicated region
        $region49: #{prior_aligned_injector.2} parent=43 // pred_check
          %p315 = pneg %p75
        $region50: #{prior_aligned_injector.2} parent=43 // pred_check_branch
          %317 = sbr.rel (%p315) target = $region52
        $region51: #{prior_aligned_injector.2} parent=43 // pred_region
          %318 = dma.done %s311, 256
        $region52: #{prior_aligned_injector.2} parent=43 // pred_fallthru
          _
        // Predicated region
        $region53: #{prior_aligned_injector.2} parent=43 // pred_check
          %p319 = pneg %p96
        $region54: #{prior_aligned_injector.2} parent=43 // pred_check_branch
          %321 = sbr.rel (%p319) target = $region56
        $region55: #{prior_aligned_injector.2} parent=43 // pred_region
          %322 = dma.done [#allocation6], 1024
        $region56: #{prior_aligned_injector.2} parent=43 // pred_fallthru
          _
        // Predicated region
        $region57: #{prior_aligned_injector.2} parent=43 // pred_check
          %p323 = pneg %p117
        $region58: #{prior_aligned_injector.2} parent=43 // pred_check_branch
          %325 = sbr.rel (%p323) target = $region60
        $region59: #{prior_aligned_injector.2} parent=43 // pred_region
          %326 = dma.done [#allocation9], 16
        $region60: #{prior_aligned_injector.2} parent=43 // pred_fallthru
          _
        // Predicated region
        $region61: #{prior_aligned_injector.2} parent=43 // pred_check
          %p327 = pneg %p138
        $region62: #{prior_aligned_injector.2} parent=43 // pred_check_branch
          %329 = sbr.rel (%p327) target = $region64
        $region63: #{prior_aligned_injector.2} parent=43 // pred_region
          %330 = dma.done [#allocation9], 2048
        $region64: #{prior_aligned_injector.2} parent=43 // pred_fallthru
          _
        // Predicated region
        $region65: #{prior_aligned_injector.2} parent=43 // pred_check
          %p331 = pneg %p159
        $region66: #{prior_aligned_injector.2} parent=43 // pred_check_branch
          %333 = sbr.rel (%p331) target = $region68
        $region67: #{prior_aligned_injector.2} parent=43 // pred_region
          %334 = dma.done [#allocation12], 32
        $region68: #{prior_aligned_injector.2} parent=43 // pred_fallthru
          _
        %s335 = sand.u32 %s36, 1
        %s336 = scalar_lea.sflag [#allocation3], %s335
        %s337 = sand.u32 %s36, 1
        %s338 = smul.addr %s337, 16
        %s339 = scalar_lea.vmem [#allocation2], %s338
        %p340 = pneg %p49
        %p341 = pneg %p46
        %s342 = sand.u32 %s28, 1
        %s343 = scalar_lea.sflag [#allocation6], %s342
        %s344 = sand.u32 %s62, 1
        %s345 = smul.addr %s344, 16
        %s346 = scalar_lea.vmem [#allocation5], %s345
        %p347 = pneg %p75
        %p348 = pneg %p72
        %p349 = pneg %p96
        %p350 = pneg %p93
        %p351 = pneg %p117
        %p352 = pneg %p114
        %p353 = pneg %p138
        %p354 = pneg %p135
        %p355 = pneg %p159
        %p356 = pneg %p156
        %p357 = pneg %p185
        %p358 = pneg %p182
        %s359 = sand.u32 %s172, 1
        %s360 = scalar_lea.sflag [#allocation4], %s359
        %s361 = sand.u32 %s172, 1
        %s362 = smul.addr %s361, 8
        %s363 = scalar_lea.vmem [#allocation13], %s362
        %v365 = vld [vmem:[%s305] sm:$0xff]
        %v366 = vld [vmem:[%s305 + $0x8] sm:$0xff]
        %v367 = vld [vmem:[%s314] sm:$0xff]
        %v368 = vld [vmem:[%s314 + $0x8] sm:$0xff]
        %v369 = vmul.f32 %v365, %v367
        %v370 = vmul.f32 %v366, %v368
        %v371 = vpack.c.bf16 %v366, %v365
        %v372 = vld [vmem:[#allocation7] sm:$0xf]
        %v373 = vld [vmem:[#allocation7 + $0x4] sm:$0xf]
        %v374 = vld [vmem:[#allocation7 + $0x8] sm:$0xf]
        %v375 = vld [vmem:[#allocation7 + $0xc] sm:$0xf]
        %v376 = vld [vmem:[#allocation7 + $0x10] sm:$0xf]
        %v377 = vld [vmem:[#allocation7 + $0x14] sm:$0xf]
        %v378 = vld [vmem:[#allocation7 + $0x18] sm:$0xf]
        %v379 = vld [vmem:[#allocation7 + $0x1c] sm:$0xf]
        %v380 = vld [vmem:[#allocation7 + $0x20] sm:$0xf]
        %v381 = vld [vmem:[#allocation7 + $0x24] sm:$0xf]
        %v382 = vld [vmem:[#allocation7 + $0x28] sm:$0xf]
        %v383 = vld [vmem:[#allocation7 + $0x2c] sm:$0xf]
        %v384 = vld [vmem:[#allocation7 + $0x30] sm:$0xf]
        %v385 = vld [vmem:[#allocation7 + $0x34] sm:$0xf]
        %v386 = vld [vmem:[#allocation7 + $0x38] sm:$0xf]
        %v387 = vld [vmem:[#allocation7 + $0x3c] sm:$0xf]
        %v388 = vld [vmem:[#allocation8] sm:$0x1]
        %v390 = vlaneseq
        %v391 = vshrl.u32 %v390, 7
        %v392 = vsub.s32 0, %v391
        %v393 = vrot.slane %v388, %v392
        %v411 = vunpack.c.l.b16 %v372
        %v412 = vunpack.c.l.b16 %v373
        %v413 = vunpack.c.l.b16 %v374
        %v414 = vunpack.c.l.b16 %v375
        %v415 = vunpack.c.l.b16 %v376
        %v416 = vunpack.c.l.b16 %v377
        %v417 = vunpack.c.l.b16 %v378
        %v418 = vunpack.c.l.b16 %v379
        %v419 = vunpack.c.l.b16 %v380
        %v420 = vunpack.c.l.b16 %v381
        %v421 = vunpack.c.l.b16 %v382
        %v422 = vunpack.c.l.b16 %v383
        %v423 = vunpack.c.l.b16 %v384
        %v424 = vunpack.c.l.b16 %v385
        %v425 = vunpack.c.l.b16 %v386
        %v426 = vunpack.c.l.b16 %v387
        %v427 = vpack.c.b16 %v412, %v411
        %v428 = vpack.c.b16 %v414, %v413
        %v429 = vpack.c.b16 %v416, %v415
        %v430 = vpack.c.b16 %v418, %v417
        %v431 = vpack.c.b16 %v420, %v419
        %v432 = vpack.c.b16 %v422, %v421
        %v433 = vpack.c.b16 %v424, %v423
        %v434 = vpack.c.b16 %v426, %v425
        %443 = vmatprep.subr.bf16.mxu0 0
        %444 = vmatpush1.bf16.msra.mxu0 %v427
        %445 = vmatprep.subr.bf16.mxu0 0
        %446 = vmatpush1.bf16.msra.mxu0 %v428
        %447 = vmatprep.subr.bf16.mxu0 0
        %448 = vmatpush1.bf16.msra.mxu0 %v429
        %449 = vmatprep.subr.bf16.mxu0 0
        %450 = vmatpush1.bf16.msra.mxu0 %v430
        %451 = vmatprep.subr.bf16.mxu0 0
        %452 = vmatpush1.bf16.msra.mxu0 %v431
        %453 = vmatprep.subr.bf16.mxu0 0
        %454 = vmatpush1.bf16.msra.mxu0 %v432
        %455 = vmatprep.subr.bf16.mxu0 0
        %456 = vmatpush1.bf16.msra.mxu0 %v433
        %457 = vmatprep.subr.bf16.mxu0 0
        %458 = vmatpush1.bf16.msra.mxu0 %v434
        %459 = vmatprep.subr.bf16.mxu0 0
        %460 = vmatpush1.bf16.msra.mxu0 0
        %461 = vmatprep.subr.bf16.mxu0 0
        %462 = vmatpush1.bf16.msra.mxu0 0
        %463 = vmatprep.subr.bf16.mxu0 0
        %464 = vmatpush1.bf16.msra.mxu0 0
        %465 = vmatprep.subr.bf16.mxu0 0
        %466 = vmatpush1.bf16.msra.mxu0 0
        %467 = vmatprep.subr.bf16.mxu0 0
        %468 = vmatpush1.bf16.msra.mxu0 0
        %469 = vmatprep.subr.bf16.mxu0 0
        %470 = vmatpush1.bf16.msra.mxu0 0
        %471 = vmatprep.subr.bf16.mxu0 0
        %472 = vmatpush1.bf16.msra.mxu0 0
        %473 = vmatprep.subr.bf16.mxu0 0
        %474 = vmatpush1.bf16.msra.mxu0 0
        %475 = vmatprep.mubr.bf16.mxu0 0
        %476 = vmatmul.mubr.bf16.gmra.mrb[0].mxu0 %v371
        %v477 = vpop.f32.mrb[0].mxu0
        %v478 = vadd.f32 %v393, %v477
        %v479 = vpop.f32.mrb[0].mxu0
        %v480 = vpop.f32.mrb[0].mxu0
        %v481 = vadd.f32 %v393, %v480
        %v482 = vpop.f32.mrb[0].mxu0
        %483 = vdwg.mxu0
        %v484 = vpack.c.bf16 %v370, %v369
        %v485 = vld [vmem:[#allocation10] sm:$0xff]
        %v486 = vld [vmem:[#allocation10 + $0x8] sm:$0xff]
        %v487 = vld [vmem:[#allocation10 + $0x10] sm:$0xff]
        %v488 = vld [vmem:[#allocation10 + $0x18] sm:$0xff]
        %v489 = vld [vmem:[#allocation10 + $0x20] sm:$0xff]
        %v490 = vld [vmem:[#allocation10 + $0x28] sm:$0xff]
        %v491 = vld [vmem:[#allocation10 + $0x30] sm:$0xff]
        %v492 = vld [vmem:[#allocation10 + $0x38] sm:$0xff]
        %v493 = vld [vmem:[#allocation10 + $0x40] sm:$0xff]
        %v494 = vld [vmem:[#allocation10 + $0x48] sm:$0xff]
        %v495 = vld [vmem:[#allocation10 + $0x50] sm:$0xff]
        %v496 = vld [vmem:[#allocation10 + $0x58] sm:$0xff]
        %v497 = vld [vmem:[#allocation10 + $0x60] sm:$0xff]
        %v498 = vld [vmem:[#allocation10 + $0x68] sm:$0xff]
        %v499 = vld [vmem:[#allocation10 + $0x70] sm:$0xff]
        %v500 = vld [vmem:[#allocation10 + $0x78] sm:$0xff]
        %v501 = vld [vmem:[#allocation11] sm:$0x3]
        %v503 = vlaneseq
        %v504 = vshrl.u32 %v503, 7
        %v505 = vsub.s32 0, %v504
        %v506 = vrot.slane %v501, %v505
        %v507 = vlaneseq
        %v508 = vshrl.u32 %v507, 7
        %v509 = vsub.s32 1, %v508
        %v510 = vrot.slane %v501, %v509
        %v529 = vunpack.c.l.b16 %v485
        %v530 = vunpack.c.h.b16 %v485
        %v531 = vunpack.c.l.b16 %v486
        %v532 = vunpack.c.h.b16 %v486
        %v533 = vunpack.c.l.b16 %v487
        %v534 = vunpack.c.h.b16 %v487
        %v535 = vunpack.c.l.b16 %v488
        %v536 = vunpack.c.h.b16 %v488
        %v537 = vunpack.c.l.b16 %v489
        %v538 = vunpack.c.h.b16 %v489
        %v539 = vunpack.c.l.b16 %v490
        %v540 = vunpack.c.h.b16 %v490
        %v541 = vunpack.c.l.b16 %v491
        %v542 = vunpack.c.h.b16 %v491
        %v543 = vunpack.c.l.b16 %v492
        %v544 = vunpack.c.h.b16 %v492
        %v545 = vunpack.c.l.b16 %v493
        %v546 = vunpack.c.h.b16 %v493
        %v547 = vunpack.c.l.b16 %v494
        %v548 = vunpack.c.h.b16 %v494
        %v549 = vunpack.c.l.b16 %v495
        %v550 = vunpack.c.h.b16 %v495
        %v551 = vunpack.c.l.b16 %v496
        %v552 = vunpack.c.h.b16 %v496
        %v553 = vunpack.c.l.b16 %v497
        %v554 = vunpack.c.h.b16 %v497
        %v555 = vunpack.c.l.b16 %v498
        %v556 = vunpack.c.h.b16 %v498
        %v557 = vunpack.c.l.b16 %v499
        %v558 = vunpack.c.h.b16 %v499
        %v559 = vunpack.c.l.b16 %v500
        %v560 = vunpack.c.h.b16 %v500
        %v561 = vpack.c.b16 %v531, %v529
        %v562 = vpack.c.b16 %v532, %v530
        %v563 = vpack.c.b16 %v535, %v533
        %v564 = vpack.c.b16 %v536, %v534
        %v565 = vpack.c.b16 %v539, %v537
        %v566 = vpack.c.b16 %v540, %v538
        %v567 = vpack.c.b16 %v543, %v541
        %v568 = vpack.c.b16 %v544, %v542
        %v569 = vpack.c.b16 %v547, %v545
        %v570 = vpack.c.b16 %v548, %v546
        %v571 = vpack.c.b16 %v551, %v549
        %v572 = vpack.c.b16 %v552, %v550
        %v573 = vpack.c.b16 %v555, %v553
        %v574 = vpack.c.b16 %v556, %v554
        %v575 = vpack.c.b16 %v559, %v557
        %v576 = vpack.c.b16 %v560, %v558
        %593 = vmatprep.subr.bf16.mxu0 %v562
        %594 = vmatpush1.bf16.msra.mxu0 %v561
        %595 = vmatprep.subr.bf16.mxu0 %v564
        %596 = vmatpush1.bf16.msra.mxu0 %v563
        %597 = vmatprep.subr.bf16.mxu0 %v566
        %598 = vmatpush1.bf16.msra.mxu0 %v565
        %599 = vmatprep.subr.bf16.mxu0 %v568
        %600 = vmatpush1.bf16.msra.mxu0 %v567
        %601 = vmatprep.subr.bf16.mxu0 %v570
        %602 = vmatpush1.bf16.msra.mxu0 %v569
        %603 = vmatprep.subr.bf16.mxu0 %v572
        %604 = vmatpush1.bf16.msra.mxu0 %v571
        %605 = vmatprep.subr.bf16.mxu0 %v574
        %606 = vmatpush1.bf16.msra.mxu0 %v573
        %607 = vmatprep.subr.bf16.mxu0 %v576
        %608 = vmatpush1.bf16.msra.mxu0 %v575
        %609 = vmatprep.subr.bf16.mxu0 0
        %610 = vmatpush1.bf16.msra.mxu0 0
        %611 = vmatprep.subr.bf16.mxu0 0
        %612 = vmatpush1.bf16.msra.mxu0 0
        %613 = vmatprep.subr.bf16.mxu0 0
        %614 = vmatpush1.bf16.msra.mxu0 0
        %615 = vmatprep.subr.bf16.mxu0 0
        %616 = vmatpush1.bf16.msra.mxu0 0
        %617 = vmatprep.subr.bf16.mxu0 0
        %618 = vmatpush1.bf16.msra.mxu0 0
        %619 = vmatprep.subr.bf16.mxu0 0
        %620 = vmatpush1.bf16.msra.mxu0 0
        %621 = vmatprep.subr.bf16.mxu0 0
        %622 = vmatpush1.bf16.msra.mxu0 0
        %623 = vmatprep.subr.bf16.mxu0 0
        %624 = vmatpush1.bf16.msra.mxu0 0
        %625 = vmatprep.mubr.bf16.mxu0 0
        %626 = vmatmul.mubr.bf16.gmra.mrb[0].mxu0 %v484
        %v627 = vpop.f32.mrb[0].mxu0
        %v628 = vadd.f32 %v506, %v627
        %v629 = vpop.f32.mrb[0].mxu0
        %v630 = vadd.f32 %v510, %v629
        %v631 = vpop.f32.mrb[0].mxu0
        %v632 = vadd.f32 %v506, %v631
        %v633 = vpop.f32.mrb[0].mxu0
        %v634 = vadd.f32 %v510, %v633
        %635 = vdwg.mxu0
        %636 = vmatprep.subr.mxu0 0.0
        %637 = vmatpush1.xpose.msra.mxu0 %v628
        %638 = vmatprep.subr.mxu0 0.0
        %639 = vmatpush1.xpose.msra.mxu0 %v632
        %640 = vmatprep.subr.mxu0 0.0
        %641 = vmatpush1.xpose.msra.mxu0 0.0
        %642 = vmatprep.subr.mxu0 0.0
        %643 = vmatpush1.xpose.msra.mxu0 0.0
        %644 = vmatprep.subr.mxu0 0.0
        %645 = vmatpush1.xpose.msra.mxu0 0.0
        %646 = vmatprep.subr.mxu0 0.0
        %647 = vmatpush1.xpose.msra.mxu0 0.0
        %648 = vmatprep.subr.mxu0 0.0
        %649 = vmatpush1.xpose.msra.mxu0 0.0
        %650 = vmatprep.subr.mxu0 0.0
        %651 = vmatpush1.xpose.msra.mxu0 0.0
        %652 = vmatprep.subr.mxu0 0.0
        %653 = vmatpush1.xpose.msra.mxu0 0.0
        %654 = vmatprep.subr.mxu0 0.0
        %655 = vmatpush1.xpose.msra.mxu0 0.0
        %656 = vmatprep.subr.mxu0 0.0
        %657 = vmatpush1.xpose.msra.mxu0 0.0
        %658 = vmatprep.subr.mxu0 0.0
        %659 = vmatpush1.xpose.msra.mxu0 0.0
        %660 = vmatprep.subr.mxu0 0.0
        %661 = vmatpush1.xpose.msra.mxu0 0.0
        %662 = vmatprep.subr.mxu0 0.0
        %663 = vmatpush1.xpose.msra.mxu0 0.0
        %664 = vmatprep.subr.mxu0 0.0
        %665 = vmatpush1.xpose.msra.mxu0 0.0
        %666 = vmatprep.subr.mxu0 0.0
        %667 = vmatpush1.xpose.msra.mxu0 0.0
        %668 = vmatprep.subr.mxu0 0.0
        %669 = vmatpush1.xpose.msra.mxu0 0.0
        %670 = vmatprep.subr.mxu0 0.0
        %671 = vmatpush1.xpose.msra.mxu0 0.0
        %672 = vmatprep.subr.mxu0 0.0
        %673 = vmatpush1.xpose.msra.mxu0 0.0
        %674 = vmatprep.subr.mxu0 0.0
        %675 = vmatpush1.xpose.msra.mxu0 0.0
        %676 = vmatprep.subr.mxu0 0.0
        %677 = vmatpush1.xpose.msra.mxu0 0.0
        %678 = vmatprep.subr.mxu0 0.0
        %679 = vmatpush1.xpose.msra.mxu0 0.0
        %680 = vmatprep.subr.mxu0 0.0
        %681 = vmatpush1.xpose.msra.mxu0 0.0
        %682 = vmatprep.subr.mxu0 0.0
        %683 = vmatpush1.xpose.msra.mxu0 0.0
        %684 = vmatprep.subr.mxu0 0.0
        %685 = vmatpush1.xpose.msra.mxu0 0.0
        %686 = vmatprep.subr.mxu0 0.0
        %687 = vmatpush1.xpose.msra.mxu0 0.0
        %688 = vmatprep.subr.mxu0 0.0
        %689 = vmatpush1.xpose.msra.mxu0 0.0
        %690 = vmatprep.subr.mxu0 0.0
        %691 = vmatpush1.xpose.msra.mxu0 0.0
        %692 = vmatprep.subr.mxu0 0.0
        %693 = vmatpush1.xpose.msra.mxu0 0.0
        %694 = vmatprep.subr.mxu0 0.0
        %695 = vmatpush1.xpose.msra.mxu0 0.0
        %696 = vmatprep.subr.mxu0 0.0
        %697 = vmatpush1.xpose.msra.mxu0 0.0
        %698 = vmatprep.subr.mxu0 0.0
        %699 = vmatpush1.xpose.msra.mxu0 0.0
        %700 = vmatprep.mubr.f32.mxu0 0.0
        %701 = vmatmul.mubr.f32.gmra.mrb[0].mxu0 %v478
        %v702 = vpop.f32.mrb[0].mxu0
        %v703 = vadd.f32 0.0, %v702
        %v704 = vpop.f32.mrb[0].mxu0
        %705 = vmatprep.mubr.f32.mxu0 0.0
        %706 = vmatmul.mubr.f32.gmra.mrb[0].mxu0 %v481
        %v707 = vpop.f32.mrb[0].mxu0
        %v708 = vadd.f32 0.0, %v707
        %v709 = vpop.f32.mrb[0].mxu0
        %710 = vdwg.mxu0
        %v711 = vmul.f32 %v703, 0.088388346
        %v712 = vmul.f32 %v708, 0.088388346
        %vm713 = vcmask 130048
        %v714 = vsel %vm713, %v711, -inf
        %715 = vmax.xlane.f32.xlu0 %v714
        %v716 = vpop.xlane.xlu0 %715
        %v717 = vsel %vm713, %v712, -inf
        %718 = vmax.xlane.f32.xlu0 %v717
        %v719 = vpop.xlane.xlu0 %718
        %v720 = vsub.f32 %v711, %v716
        %v721 = vsub.f32 %v712, %v719
        %v722 = vmul.f32 %v720, 1.442695
        %v723 = vpow.pop %v722
        %v724 = vmul.f32 %v721, 1.442695
        %v725 = vpow.pop %v724
        %v726 = vsel %vm713, %v723, 0.0
        %727 = vadd.xlane.f32.xlu0 %v726
        %v728 = vpop.xlane.xlu0 %727
        %v729 = vsel %vm713, %v725, 0.0
        %730 = vadd.xlane.f32.xlu0 %v729
        %v731 = vpop.xlane.xlu0 %730
        %v732 = vrcp.pop %v728
        %v733 = vrcp.pop %v731
        %v734 = vmul.f32 %v723, %v732
        %v735 = vmul.f32 %v725, %v733
        %v737 = vsel %vm713, %v734, 0
        %v740 = vsel %vm713, %v735, 0
        %742 = vmatprep.subr.mxu0 0.0
        %743 = vmatpush1.msra.mxu0 %v630
        %744 = vmatprep.subr.mxu0 0.0
        %745 = vmatpush1.msra.mxu0 %v634
        %746 = vmatprep.subr.mxu0 0.0
        %747 = vmatpush1.msra.mxu0 0.0
        %748 = vmatprep.subr.mxu0 0.0
        %749 = vmatpush1.msra.mxu0 0.0
        %750 = vmatprep.subr.mxu0 0.0
        %751 = vmatpush1.msra.mxu0 0.0
        %752 = vmatprep.subr.mxu0 0.0
        %753 = vmatpush1.msra.mxu0 0.0
        %754 = vmatprep.subr.mxu0 0.0
        %755 = vmatpush1.msra.mxu0 0.0
        %756 = vmatprep.subr.mxu0 0.0
        %757 = vmatpush1.msra.mxu0 0.0
        %758 = vmatprep.subr.mxu0 0.0
        %759 = vmatpush1.msra.mxu0 0.0
        %760 = vmatprep.subr.mxu0 0.0
        %761 = vmatpush1.msra.mxu0 0.0
        %762 = vmatprep.subr.mxu0 0.0
        %763 = vmatpush1.msra.mxu0 0.0
        %764 = vmatprep.subr.mxu0 0.0
        %765 = vmatpush1.msra.mxu0 0.0
        %766 = vmatprep.subr.mxu0 0.0
        %767 = vmatpush1.msra.mxu0 0.0
        %768 = vmatprep.subr.mxu0 0.0
        %769 = vmatpush1.msra.mxu0 0.0
        %770 = vmatprep.subr.mxu0 0.0
        %771 = vmatpush1.msra.mxu0 0.0
        %772 = vmatprep.subr.mxu0 0.0
        %773 = vmatpush1.msra.mxu0 0.0
        %774 = vmatprep.subr.mxu0 0.0
        %775 = vmatpush1.msra.mxu0 0.0
        %776 = vmatprep.subr.mxu0 0.0
        %777 = vmatpush1.msra.mxu0 0.0
        %778 = vmatprep.subr.mxu0 0.0
        %779 = vmatpush1.msra.mxu0 0.0
        %780 = vmatprep.subr.mxu0 0.0
        %781 = vmatpush1.msra.mxu0 0.0
        %782 = vmatprep.subr.mxu0 0.0
        %783 = vmatpush1.msra.mxu0 0.0
        %784 = vmatprep.subr.mxu0 0.0
        %785 = vmatpush1.msra.mxu0 0.0
        %786 = vmatprep.subr.mxu0 0.0
        %787 = vmatpush1.msra.mxu0 0.0
        %788 = vmatprep.subr.mxu0 0.0
        %789 = vmatpush1.msra.mxu0 0.0
        %790 = vmatprep.subr.mxu0 0.0
        %791 = vmatpush1.msra.mxu0 0.0
        %792 = vmatprep.subr.mxu0 0.0
        %793 = vmatpush1.msra.mxu0 0.0
        %794 = vmatprep.subr.mxu0 0.0
        %795 = vmatpush1.msra.mxu0 0.0
        %796 = vmatprep.subr.mxu0 0.0
        %797 = vmatpush1.msra.mxu0 0.0
        %798 = vmatprep.subr.mxu0 0.0
        %799 = vmatpush1.msra.mxu0 0.0
        %800 = vmatprep.subr.mxu0 0.0
        %801 = vmatpush1.msra.mxu0 0.0
        %802 = vmatprep.subr.mxu0 0.0
        %803 = vmatpush1.msra.mxu0 0.0
        %804 = vmatprep.subr.mxu0 0.0
        %805 = vmatpush1.msra.mxu0 0.0
        %806 = vmatprep.mubr.f32.mxu0 0.0
        %807 = vmatmul.mubr.f32.gmra.mrb[0].mxu0 %v737
        %v808 = vpop.f32.mrb[0].mxu0
        %v809 = vadd.f32 0.0, %v808
        %v810 = vpop.f32.mrb[0].mxu0
        %811 = vmatprep.mubr.f32.mxu0 0.0
        %812 = vmatmul.mubr.f32.gmra.mrb[0].mxu0 %v740
        %v813 = vpop.f32.mrb[0].mxu0
        %v814 = vadd.f32 0.0, %v813
        %v815 = vpop.f32.mrb[0].mxu0
        %816 = vdwg.mxu0
        %v817 = vpack.c.bf16 %v814, %v809
        %v819 = vunpack.c.l.b16 %v817
        %v820 = vunpack.c.h.b16 %v817
        %v821 = vpack.c.b16 %v819, %v819
        %v822 = vpack.c.b16 %v820, %v820
        %825 = vst [vmem:[%s363] sm:$0xf] %v821
        %826 = vst [vmem:[%s363 + $0x4] sm:$0xf] %v822
        %s827 = sand.u32 %s172, 1
        %s828 = scalar_lea.sflag [#allocation4], %s827
        %s829 = sand.u32 %s172, 1
        %s830 = smul.addr %s829, 8
        %s831 = scalar_lea.vmem [#allocation13], %s830
        // Predicated region
        $region69: #{prior_aligned_injector.2} parent=43 // pred_check
          %p832 = pneg %p182
        $region70: #{prior_aligned_injector.2} parent=43 // pred_check_branch
          %834 = sbr.rel (%p832) target = $region72
        $region71: #{prior_aligned_injector.2} parent=43 // pred_region
          %s836 = ssub.s32 128, 128
          %837 = vsyncadd %s828, %s836
          %s838 = smul.addr %s28, 2
          %s839 = smul.addr %s838, 64
          %s840 = scalar_lea.hbm %s6, %s839
          %s841 = sshll.u32 %s831, 4
          %s842 = int_to_ptr.vmem [resolvable:$true] %s841
          %847 = dma.vmem_to_hbm [thread:$0]  %s842, 128, %s840, %s828, 64, 64, 4
        $region72: #{prior_aligned_injector.2} parent=43 // pred_fallthru
          _
      $region44: #{prior_aligned_injector.2} parent=5 // pred_fallthru
        _
      %p848 = scmp.le.s32.totalorder 2, %s23
      // Predicated region
      $region73: #{prior_aligned_injector.2} parent=5 // pred_check
        %p849 = pneg %p848
      $region74: #{prior_aligned_injector.2} parent=5 // pred_check_branch
        %851 = sbr.rel (%p849) target = $region76
      $region75: #{prior_aligned_injector.2} parent=5 // pred_region
        %s852 = ssub.s32 %s23, 2
        // Predicated region
        $region77: #{prior_aligned_injector.2} parent=75 // pred_check
          %p853 = pneg %p188
        $region78: #{prior_aligned_injector.2} parent=75 // pred_check_branch
          %855 = sbr.rel (%p853) target = $region80
        $region79: #{prior_aligned_injector.2} parent=75 // pred_region
          %s856 = sand.u32 %s173, 1
          %s857 = scalar_lea.sflag [#allocation4], %s856
          %s858 = sand.u32 %s173, 1
          %s859 = smul.addr %s858, 8
          %s860 = scalar_lea.vmem [#allocation13], %s859
          %861 = dma.done %s857, 128
        $region80: #{prior_aligned_injector.2} parent=75 // pred_fallthru
          _
      $region76: #{prior_aligned_injector.2} parent=5 // pred_fallthru
        _
    $region6: #{prior_aligned_injector.2} parent=1 // loop_footer
      %s27 = sadd.s32 1, %s23
    $region7: #{prior_aligned_injector.2} parent=1 // loop_footer_branch
      %22 = sbr.rel target = $region3
    $region8: #{prior_aligned_injector.2} parent=1 // loop_exit
      _
    %862 = vsyncpa [#allocation3], 1
    %s863 = scalar_lea.sflag [#allocation3], 1
    %864 = vsyncpa %s863, 1
    %865 = vsyncpa [#allocation6], 1
    %s866 = scalar_lea.sflag [#allocation6], 1
    %867 = vsyncpa %s866, 1
    %868 = vsyncpa [#allocation9], 1
    %869 = vsyncpa [#allocation12], 1
    %870 = vsyncpa [#allocation4], 1
    %s871 = scalar_lea.sflag [#allocation4], 1
    %872 = vsyncpa %s871, 1

</llo_original>
